<compile_context>
chip_gen: v7x
topology: tpu7x:2x2x1
jax: 0.10.0
libtpu: 0.0.40
codegen_flags: <defaults>
</compile_context>

<pallas_src>
import numpy as np
import jax
import jax.numpy as jnp
from jax.experimental import pallas as pl
from jax.experimental.pallas import tpu as pltpu

NEG_SLOPE = 0.1
BN_EPS = 1e-5
NEG_INF = -1e30


def _leaky(x):
    return jnp.where(x >= 0, x, NEG_SLOPE * x)


# ------------------------------ Pallas kernel ------------------------------

def gat_block_kernel(
    x_ref,        # [N, input_dim]
    adj_ref,      # [N, N]      adj[i, j] = 1.0 iff edge (source j -> target i), incl. self loops
    eattr_ref,    # [N*N, E]    dense edge attrs, row i*N + j holds attr of edge (j -> i)
    w_emb_ref,    # [input_dim, hidden]   (BatchNorm eval folded in)
    b_emb_ref,    # [1, hidden]
    w_lr_ref,     # [L, hidden, 2*H*C]    concat(lin_l.W, lin_r.W) per layer
    b_lr_ref,     # [L, 1, 2*H*C]
    w_edge_ref,   # [L, E, H*C]           lin_edge.W per layer (no bias)
    att_ref,      # [L, H, C]             attention vector per layer / head
    gbias_ref,    # [L, 1, C]             GATv2 output bias (concat=False -> C = hidden)
    w_out_ref,    # [hidden, output_dim]
    b_out_ref,    # [1, output_dim]
    o_ref,        # [N, output_dim]
):
    N = adj_ref.shape[0]
    L, H, C = att_ref.shape
    HC = H * C

    x = x_ref[...]
    edge_mask = adj_ref[...] > 0.0          # [N, N]  (hoisted out of the layer loop)
    eattr = eattr_ref[...]                  # [N*N, E]

    # ---- input embed: Linear (BatchNorm1d eval folded) -> LeakyReLU ----
    h = jnp.dot(x, w_emb_ref[...], preferred_element_type=jnp.float32) + b_emb_ref[...]
    h = _leaky(h)

    # ---- GATv2Conv x L (concat=False => mean over heads), statically unrolled ----
    for l in range(L):
        w_lr = w_lr_ref[l]                  # [hidden, 2*HC]
        b_lr = b_lr_ref[l]                  # [1, 2*HC]
        w_e = w_edge_ref[l]                 # [E, HC]
        att_l = att_ref[l]                  # [H, C]
        gbias = gbias_ref[l]                # [1, C]

        xlr = jnp.dot(h, w_lr, preferred_element_type=jnp.float32) + b_lr   # [N, 2*HC]
        xl = xlr[:, :HC]                    # lin_l(h)  (source-side messages)
        xr = xlr[:, HC:]                    # lin_r(h)  (target-side)

        g = jnp.dot(eattr, w_e, preferred_element_type=jnp.float32)         # [N*N, HC]
        g3 = g.reshape(N, N, HC)            # [target i, source j, HC]  (lane dim preserved)

        # s[i, j, :] = LeakyReLU(x_l[j] + x_r[i] + W_e e_{j->i})
        s = _leaky(xl[None, :, :] + xr[:, None, :] + g3)                    # [N, N, HC]

        out_acc = jnp.zeros((N, C), jnp.float32)
        for hh in range(H):
            csl = slice(hh * C, (hh + 1) * C)
            att_h = att_l[hh:hh + 1, :][None, :, :]                         # [1, 1, C]
            logit = jnp.sum(s[:, :, csl] * att_h, axis=-1)                  # [N, N]
            logit = jnp.where(edge_mask, logit, jnp.float32(NEG_INF))
            m = jnp.max(logit, axis=-1, keepdims=True)
            p = jnp.exp(logit - m)
            alpha = p / jnp.sum(p, axis=-1, keepdims=True)                  # softmax over sources j
            # TODO(synk): training-mode dropout on alpha omitted (eval => identity).
            out_acc = out_acc + jnp.dot(alpha, xl[:, csl],
                                        preferred_element_type=jnp.float32)
        h = out_acc * (1.0 / H) + gbias     # mean over heads + bias

    # ---- output layer: Linear -> LeakyReLU ----
    out = jnp.dot(h, w_out_ref[...], preferred_element_type=jnp.float32) + b_out_ref[...]
    o_ref[...] = _leaky(out).astype(o_ref.dtype)


# ------------------------------ wrapper ------------------------------------

def _fold_batchnorm(w, b, gamma, beta, mean, var):
    scale = gamma * jax.lax.rsqrt(var + BN_EPS)                      # [hidden]
    return w * scale[None, :], (b - mean[None, :]) * scale[None, :] + beta[None, :]


def _add_self_loops(edge_index, edge_attr, num_nodes):
    """PyG add_self_loops(fill_value='mean'): self-loop attr of node i = mean of attrs of its
    incoming edges (0 if none). Input edge list is assumed to have no self loops."""
    src, dst = edge_index[0], edge_index[1]
    e_dim = edge_attr.shape[1]
    deg = jnp.zeros((num_nodes,), jnp.float32).at[dst].add(1.0)
    attr_sum = jnp.zeros((num_nodes, e_dim), jnp.float32).at[dst].add(edge_attr)
    loop_attr = attr_sum / jnp.maximum(deg, 1.0)[:, None]
    diag = jnp.arange(num_nodes, dtype=src.dtype)
    return (jnp.concatenate([src, diag]),
            jnp.concatenate([dst, diag]),
            jnp.concatenate([edge_attr, loop_attr], axis=0))


def _dense_graph(src, dst, edge_attr, num_nodes):
    e_dim = edge_attr.shape[1]
    adj = jnp.zeros((num_nodes, num_nodes), jnp.float32).at[dst, src].set(1.0)
    eat = jnp.zeros((num_nodes, num_nodes, e_dim), jnp.float32).at[dst, src].set(edge_attr)
    return adj, eat.reshape(num_nodes * num_nodes, e_dim)


@jax.jit
def graph_attention_block_forward(x, edge_index, edge_attr, params):
    """x: [N, input_dim]; edge_index: [2, E] int32 (row0=source, row1=target);
    edge_attr: [E, edge_dim]; params: dict from init_params."""
    n_nodes = x.shape[0]
    output_dim = params["w_out"].shape[1]

    w_emb_f, b_emb_f = _fold_batchnorm(params["w_emb"], params["b_emb"],
                                       params["bn_gamma"], params["bn_beta"],
                                       params["bn_mean"], params["bn_var"])
    src, dst, eattr = _add_self_loops(edge_index, edge_attr, n_nodes)
    adj, eattr_flat = _dense_graph(src, dst, eattr, n_nodes)

    inputs = (x, adj, eattr_flat,
              w_emb_f, b_emb_f,
              params["w_lr"], params["b_lr"], params["w_edge"],
              params["att"], params["gat_bias"],
              params["w_out"], params["b_out"])

    vmem = pltpu.MemorySpace.VMEM
    return pl.pallas_call(
        gat_block_kernel,
        out_shape=jax.ShapeDtypeStruct((n_nodes, output_dim), jnp.float32),
        in_specs=[pl.BlockSpec(memory_space=vmem) for _ in inputs],
        out_specs=pl.BlockSpec(memory_space=vmem),
        compiler_params=pltpu.CompilerParams(vmem_limit_bytes=32 * 1024 * 1024),
    )(*inputs)


# ------------------------------ params & reference --------------------------

def init_params(key, input_dim, edge_dim, output_dim, heads=4, hidden_dim=32, hidden_layers=2):
    """Parameter shapes mirror torch / PyG GATv2Conv (weights stored transposed: [in, out])."""
    H, C = heads, hidden_dim
    keys = iter(jax.random.split(key, 8 + 8 * hidden_layers))

    def linear(fan_in, fan_out, bias=True):
        bound = 1.0 / float(np.sqrt(fan_in))
        w = jax.random.uniform(next(keys), (fan_in, fan_out), jnp.float32, -bound, bound)
        b = (jax.random.uniform(next(keys), (1, fan_out), jnp.float32, -bound, bound)
             if bias else None)
        return w, b

    w_emb, b_emb = linear(input_dim, hidden_dim)
    # Non-trivial BatchNorm1d (eval) params/buffers so the wrapper-side folding is exercised.
    bn_gamma = jax.random.uniform(next(keys), (hidden_dim,), jnp.float32, 0.5, 1.5)
    bn_beta = jax.random.uniform(next(keys), (hidden_dim,), jnp.float32, -0.5, 0.5)
    bn_mean = 0.1 * jax.random.normal(next(keys), (hidden_dim,), jnp.float32)
    bn_var = jax.random.uniform(next(keys), (hidden_dim,), jnp.float32, 0.5, 1.5)

    w_lr, b_lr, w_edge, att, gat_bias = [], [], [], [], []
    for _ in range(hidden_layers):
        w_l, b_l = linear(hidden_dim, H * C)
        w_r, b_r = linear(hidden_dim, H * C)
        w_e, _ = linear(edge_dim, H * C, bias=False)
        a = jax.random.normal(next(keys), (H, C), jnp.float32) / float(np.sqrt(C))
        gb = jax.random.uniform(next(keys), (1, C), jnp.float32,
                                -1.0 / float(np.sqrt(C)), 1.0 / float(np.sqrt(C)))
        w_lr.append(jnp.concatenate([w_l, w_r], axis=1))     # [hidden, 2*H*C]
        b_lr.append(jnp.concatenate([b_l, b_r], axis=1))     # [1, 2*H*C]
        w_edge.append(w_e)
        att.append(a)
        gat_bias.append(gb)

    w_out, b_out = linear(hidden_dim, output_dim)

    return {
        "w_emb": w_emb, "b_emb": b_emb,
        "bn_gamma": bn_gamma, "bn_beta": bn_beta, "bn_mean": bn_mean, "bn_var": bn_var,
        "w_lr": jnp.stack(w_lr), "b_lr": jnp.stack(b_lr), "w_edge": jnp.stack(w_edge),
        "att": jnp.stack(att), "gat_bias": jnp.stack(gat_bias),
        "w_out": w_out, "b_out": b_out,
    }


def _reference_forward(x, edge_index, edge_attr, p):
    """Independent pure-JAX (edge-list / segment-op) reference for the same forward pass."""
    n = x.shape[0]
    L, H, C = p["att"].shape
    HC = H * C

    h = x @ p["w_emb"] + p["b_emb"]
    scale = p["bn_gamma"] / jnp.sqrt(p["bn_var"] + BN_EPS)
    h = (h - p["bn_mean"][None, :]) * scale[None, :] + p["bn_beta"][None, :]
    h = _leaky(h)

    src, dst, eattr = _add_self_loops(edge_index, edge_attr, n)
    for l in range(L):
        xlr = h @ p["w_lr"][l] + p["b_lr"][l]
        xl = xlr[:, :HC].reshape(n, H, C)
        xr = xlr[:, HC:].reshape(n, H, C)
        g = (eattr @ p["w_edge"][l]).reshape(-1, H, C)
        s = _leaky(xl[src] + xr[dst] + g)                       # [E', H, C]
        logit = jnp.sum(s * p["att"][l][None, :, :], axis=-1)   # [E', H]
        m = jax.ops.segment_max(logit, dst, num_segments=n)
        pe = jnp.exp(logit - m[dst])
        denom = jax.ops.segment_sum(pe, dst, num_segments=n)
        alpha = pe / denom[dst]
        msg = xl[src] * alpha[:, :, None]
        out = jax.ops.segment_sum(msg, dst, num_segments=n)     # [N, H, C]
        h = out.mean(axis=1) + p["gat_bias"][l]
    out = h @ p["w_out"] + p["b_out"]
    return _leaky(out)


# ------------------------------ demo ----------------------------------------

if __name__ == "__main__":
    N_NODES, INPUT_DIM, EDGE_DIM, OUTPUT_DIM = 8, 16, 4, 8
    HEADS, HIDDEN_DIM, HIDDEN_LAYERS = 4, 32, 2

    key = jax.random.PRNGKey(0)
    k_x, k_e, k_p = jax.random.split(key, 3)

    x = jax.random.normal(k_x, (N_NODES, INPUT_DIM), jnp.float32)

    # bidirectional ring graph (no self loops; they are added with 'mean' fill inside the forward)
    idx = np.arange(N_NODES)
    src = np.concatenate([idx, (idx + 1) % N_NODES])
    dst = np.concatenate([(idx + 1) % N_NODES, idx])
    edge_index = jnp.asarray(np.stack([src, dst]), dtype=jnp.int32)          # [2, E]
    edge_attr = jax.random.normal(k_e, (edge_index.shape[1], EDGE_DIM), jnp.float32)

    params = init_params(k_p, INPUT_DIM, EDGE_DIM, OUTPUT_DIM,
                         heads=HEADS, hidden_dim=HIDDEN_DIM, hidden_layers=HIDDEN_LAYERS)

    out = graph_attention_block_forward(x, edge_index, edge_attr, params)
    out = jax.block_until_ready(out)

    ref = _reference_forward(x, edge_index, edge_attr, params)
    assert out.shape == (N_NODES, OUTPUT_DIM)
    err = jnp.max(jnp.abs(out - ref))
    assert jnp.allclose(out, ref, atol=1e-3, rtol=1e-3), f"mismatch vs reference, max err {err}"

    print("KERNEL_OK")
</pallas_src>

<mosaic_0001>
module attributes {stable_mosaic.version = 11 : i64} {
  func.func private @main(%arg0: i32) attributes {dimension_semantics = [#tpu.dimension_semantics<core_parallel>], iteration_bounds = array<i64: 2>, tpu.core_type = #tpu.core_type<sc_scalar_subcore>, window_params = []} {
    return
  }
}

module attributes {stable_mosaic.version = 11 : i64} {
  func.func private @main(%arg0: i32) attributes {dimension_semantics = [#tpu.dimension_semantics<core_parallel>], iteration_bounds = array<i64: 2>, tpu.core_type = #tpu.core_type<sc_scalar_subcore>, window_params = []} {
    return
  }
}

module attributes {stable_mosaic.version = 11 : i64} {
  func.func @gat_block_kernel(%arg0: memref<8x16xf32, #tpu.memory_space<vmem>>, %arg1: memref<8x8xf32, #tpu.memory_space<vmem>>, %arg2: memref<64x4xf32, #tpu.memory_space<vmem>>, %arg3: memref<16x32xf32, #tpu.memory_space<vmem>>, %arg4: memref<1x32xf32, #tpu.memory_space<vmem>>, %arg5: memref<2x32x256xf32, #tpu.memory_space<vmem>>, %arg6: memref<2x1x256xf32, #tpu.memory_space<vmem>>, %arg7: memref<2x4x128xf32, #tpu.memory_space<vmem>>, %arg8: memref<2x4x32xf32, #tpu.memory_space<vmem>>, %arg9: memref<2x1x32xf32, #tpu.memory_space<vmem>>, %arg10: memref<32x8xf32, #tpu.memory_space<vmem>>, %arg11: memref<1x8xf32, #tpu.memory_space<vmem>>, %arg12: memref<8x8xf32, #tpu.memory_space<vmem>>) attributes {dimension_semantics = [], scalar_prefetch = 0 : i64, scratch_operands = 0 : i64, tpu.core_type = #tpu.core_type<tc>} {
    %c0 = arith.constant 0 : index
    %c0_0 = arith.constant 0 : index
    %0 = vector.load %arg0[%c0, %c0_0] : memref<8x16xf32, #tpu.memory_space<vmem>>, vector<8x16xf32>
    %c0_1 = arith.constant 0 : index
    %c0_2 = arith.constant 0 : index
    %1 = vector.load %arg1[%c0_1, %c0_2] : memref<8x8xf32, #tpu.memory_space<vmem>>, vector<8x8xf32>
    %cst = arith.constant 0.000000e+00 : f32
    %2 = vector.broadcast %cst : f32 to vector<8x8xf32>
    %3 = arith.cmpf ogt, %1, %2 : vector<8x8xf32>
    %c0_3 = arith.constant 0 : index
    %c0_4 = arith.constant 0 : index
    %4 = vector.load %arg2[%c0_3, %c0_4] : memref<64x4xf32, #tpu.memory_space<vmem>>, vector<64x4xf32>
    %c0_5 = arith.constant 0 : index
    %c0_6 = arith.constant 0 : index
    %5 = vector.load %arg3[%c0_5, %c0_6] : memref<16x32xf32, #tpu.memory_space<vmem>>, vector<16x32xf32>
    %cst_7 = arith.constant dense<0.000000e+00> : vector<8x32xf32>
    %6 = tpu.matmul %0, %5, %cst_7 {dimension_numbers = #tpu.dot_dimension_numbers<[1], [0], [0], [1], [0, 0, 1, 1], [], []>} : vector<8x16xf32>, vector<16x32xf32>, vector<8x32xf32> -> vector<8x32xf32>
    %c0_8 = arith.constant 0 : index
    %c0_9 = arith.constant 0 : index
    %7 = vector.load %arg4[%c0_8, %c0_9] : memref<1x32xf32, #tpu.memory_space<vmem>>, vector<1x32xf32>
    %8 = vector.broadcast %7 : vector<1x32xf32> to vector<8x32xf32>
    %9 = arith.addf %6, %8 : vector<8x32xf32>
    %cst_10 = arith.constant 0.000000e+00 : f32
    %10 = vector.broadcast %cst_10 : f32 to vector<8x32xf32>
    %11 = arith.cmpf oge, %9, %10 : vector<8x32xf32>
    %cst_11 = arith.constant 1.000000e-01 : f32
    %12 = vector.broadcast %cst_11 : f32 to vector<8x32xf32>
    %13 = arith.mulf %12, %9 : vector<8x32xf32>
    %14 = arith.select %11, %9, %13 : vector<8x32xi1>, vector<8x32xf32>
    %c0_12 = arith.constant 0 : index
    %c0_13 = arith.constant 0 : index
    %c0_14 = arith.constant 0 : index
    %15 = vector.load %arg5[%c0_12, %c0_13, %c0_14] : memref<2x32x256xf32, #tpu.memory_space<vmem>>, vector<1x32x256xf32>
    %16 = vector.shape_cast %15 : vector<1x32x256xf32> to vector<32x256xf32>
    %c0_15 = arith.constant 0 : index
    %c0_16 = arith.constant 0 : index
    %c0_17 = arith.constant 0 : index
    %17 = vector.load %arg6[%c0_15, %c0_16, %c0_17] : memref<2x1x256xf32, #tpu.memory_space<vmem>>, vector<1x1x256xf32>
    %18 = vector.shape_cast %17 : vector<1x1x256xf32> to vector<1x256xf32>
    %c0_18 = arith.constant 0 : index
    %c0_19 = arith.constant 0 : index
    %c0_20 = arith.constant 0 : index
    %19 = vector.load %arg7[%c0_18, %c0_19, %c0_20] : memref<2x4x128xf32, #tpu.memory_space<vmem>>, vector<1x4x128xf32>
    %20 = vector.shape_cast %19 : vector<1x4x128xf32> to vector<4x128xf32>
    %c0_21 = arith.constant 0 : index
    %c0_22 = arith.constant 0 : index
    %c0_23 = arith.constant 0 : index
    %21 = vector.load %arg8[%c0_21, %c0_22, %c0_23] : memref<2x4x32xf32, #tpu.memory_space<vmem>>, vector<1x4x32xf32>
    %22 = vector.shape_cast %21 : vector<1x4x32xf32> to vector<4x32xf32>
    %c0_24 = arith.constant 0 : index
    %c0_25 = arith.constant 0 : index
    %c0_26 = arith.constant 0 : index
    %23 = vector.load %arg9[%c0_24, %c0_25, %c0_26] : memref<2x1x32xf32, #tpu.memory_space<vmem>>, vector<1x1x32xf32>
    %24 = vector.shape_cast %23 : vector<1x1x32xf32> to vector<1x32xf32>
    %cst_27 = arith.constant dense<0.000000e+00> : vector<8x256xf32>
    %25 = tpu.matmul %14, %16, %cst_27 {dimension_numbers = #tpu.dot_dimension_numbers<[1], [0], [0], [1], [0, 0, 1, 1], [], []>} : vector<8x32xf32>, vector<32x256xf32>, vector<8x256xf32> -> vector<8x256xf32>
    %26 = vector.broadcast %18 : vector<1x256xf32> to vector<8x256xf32>
    %27 = arith.addf %25, %26 : vector<8x256xf32>
    %28 = vector.extract_strided_slice %27 {offsets = [0, 0], sizes = [8, 128], strides = [1, 1]} : vector<8x256xf32> to vector<8x128xf32>
    %29 = vector.extract_strided_slice %27 {offsets = [0, 128], sizes = [8, 128], strides = [1, 1]} : vector<8x256xf32> to vector<8x128xf32>
    %cst_28 = arith.constant dense<0.000000e+00> : vector<64x128xf32>
    %30 = tpu.matmul %4, %20, %cst_28 {dimension_numbers = #tpu.dot_dimension_numbers<[1], [0], [0], [1], [0, 0, 1, 1], [], []>} : vector<64x4xf32>, vector<4x128xf32>, vector<64x128xf32> -> vector<64x128xf32>
    %31 = vector.shape_cast %30 : vector<64x128xf32> to vector<8x8x128xf32>
    %32 = vector.shape_cast %28 : vector<8x128xf32> to vector<1x8x128xf32>
    %33 = vector.shape_cast %29 : vector<8x128xf32> to vector<8x1x128xf32>
    %34 = vector.broadcast %32 : vector<1x8x128xf32> to vector<8x8x128xf32>
    %35 = vector.broadcast %33 : vector<8x1x128xf32> to vector<8x8x128xf32>
    %36 = arith.addf %34, %35 : vector<8x8x128xf32>
    %37 = arith.addf %36, %31 : vector<8x8x128xf32>
    %cst_29 = arith.constant 0.000000e+00 : f32
    %38 = vector.broadcast %cst_29 : f32 to vector<8x8x128xf32>
    %39 = arith.cmpf oge, %37, %38 : vector<8x8x128xf32>
    %cst_30 = arith.constant 1.000000e-01 : f32
    %40 = vector.broadcast %cst_30 : f32 to vector<8x8x128xf32>
    %41 = arith.mulf %40, %37 : vector<8x8x128xf32>
    %42 = arith.select %39, %37, %41 : vector<8x8x128xi1>, vector<8x8x128xf32>
    %cst_31 = arith.constant 0.000000e+00 : f32
    %43 = vector.broadcast %cst_31 : f32 to vector<8x32xf32>
    %44 = vector.extract_strided_slice %22 {offsets = [0, 0], sizes = [1, 32], strides = [1, 1]} : vector<4x32xf32> to vector<1x32xf32>
    %45 = vector.shape_cast %44 : vector<1x32xf32> to vector<1x1x32xf32>
    %46 = vector.extract_strided_slice %42 {offsets = [0, 0, 0], sizes = [8, 8, 32], strides = [1, 1, 1]} : vector<8x8x128xf32> to vector<8x8x32xf32>
    %47 = vector.broadcast %45 : vector<1x1x32xf32> to vector<8x8x32xf32>
    %48 = arith.mulf %46, %47 : vector<8x8x32xf32>
    %cst_32 = arith.constant dense<0.000000e+00> : vector<8x8xf32>
    %49 = vector.multi_reduction <add>, %48, %cst_32 [2] : vector<8x8x32xf32> to vector<8x8xf32>
    %cst_33 = arith.constant -1.000000e+30 : f32
    %50 = vector.broadcast %cst_33 : f32 to vector<8x8xf32>
    %51 = arith.select %3, %49, %50 : vector<8x8xi1>, vector<8x8xf32>
    %cst_34 = arith.constant dense<0xFF800000> : vector<8xf32>
    %52 = vector.multi_reduction <maximumf>, %51, %cst_34 [1] : vector<8x8xf32> to vector<8xf32>
    %53 = vector.shape_cast %52 : vector<8xf32> to vector<8x1xf32>
    %54 = vector.broadcast %53 : vector<8x1xf32> to vector<8x8xf32>
    %55 = arith.subf %51, %54 : vector<8x8xf32>
    %56 = math.exp %55 : vector<8x8xf32>
    %cst_35 = arith.constant dense<0.000000e+00> : vector<8xf32>
    %57 = vector.multi_reduction <add>, %56, %cst_35 [1] : vector<8x8xf32> to vector<8xf32>
    %58 = vector.shape_cast %57 : vector<8xf32> to vector<8x1xf32>
    %59 = vector.broadcast %58 : vector<8x1xf32> to vector<8x8xf32>
    %60 = arith.divf %56, %59 : vector<8x8xf32>
    %61 = vector.extract_strided_slice %28 {offsets = [0, 0], sizes = [8, 32], strides = [1, 1]} : vector<8x128xf32> to vector<8x32xf32>
    %cst_36 = arith.constant dense<0.000000e+00> : vector<8x32xf32>
    %62 = tpu.matmul %60, %61, %cst_36 {dimension_numbers = #tpu.dot_dimension_numbers<[1], [0], [0], [1], [0, 0, 1, 1], [], []>} : vector<8x8xf32>, vector<8x32xf32>, vector<8x32xf32> -> vector<8x32xf32>
    %63 = arith.addf %43, %62 : vector<8x32xf32>
    %64 = vector.extract_strided_slice %22 {offsets = [1, 0], sizes = [1, 32], strides = [1, 1]} : vector<4x32xf32> to vector<1x32xf32>
    %65 = vector.shape_cast %64 : vector<1x32xf32> to vector<1x1x32xf32>
    %66 = vector.extract_strided_slice %42 {offsets = [0, 0, 32], sizes = [8, 8, 32], strides = [1, 1, 1]} : vector<8x8x128xf32> to vector<8x8x32xf32>
    %67 = vector.broadcast %65 : vector<1x1x32xf32> to vector<8x8x32xf32>
    %68 = arith.mulf %66, %67 : vector<8x8x32xf32>
    %cst_37 = arith.constant dense<0.000000e+00> : vector<8x8xf32>
    %69 = vector.multi_reduction <add>, %68, %cst_37 [2] : vector<8x8x32xf32> to vector<8x8xf32>
    %cst_38 = arith.constant -1.000000e+30 : f32
    %70 = vector.broadcast %cst_38 : f32 to vector<8x8xf32>
    %71 = arith.select %3, %69, %70 : vector<8x8xi1>, vector<8x8xf32>
    %cst_39 = arith.constant dense<0xFF800000> : vector<8xf32>
    %72 = vector.multi_reduction <maximumf>, %71, %cst_39 [1] : vector<8x8xf32> to vector<8xf32>
    %73 = vector.shape_cast %72 : vector<8xf32> to vector<8x1xf32>
    %74 = vector.broadcast %73 : vector<8x1xf32> to vector<8x8xf32>
    %75 = arith.subf %71, %74 : vector<8x8xf32>
    %76 = math.exp %75 : vector<8x8xf32>
    %cst_40 = arith.constant dense<0.000000e+00> : vector<8xf32>
    %77 = vector.multi_reduction <add>, %76, %cst_40 [1] : vector<8x8xf32> to vector<8xf32>
    %78 = vector.shape_cast %77 : vector<8xf32> to vector<8x1xf32>
    %79 = vector.broadcast %78 : vector<8x1xf32> to vector<8x8xf32>
    %80 = arith.divf %76, %79 : vector<8x8xf32>
    %81 = vector.extract_strided_slice %28 {offsets = [0, 32], sizes = [8, 32], strides = [1, 1]} : vector<8x128xf32> to vector<8x32xf32>
    %cst_41 = arith.constant dense<0.000000e+00> : vector<8x32xf32>
    %82 = tpu.matmul %80, %81, %cst_41 {dimension_numbers = #tpu.dot_dimension_numbers<[1], [0], [0], [1], [0, 0, 1, 1], [], []>} : vector<8x8xf32>, vector<8x32xf32>, vector<8x32xf32> -> vector<8x32xf32>
    %83 = arith.addf %63, %82 : vector<8x32xf32>
    %84 = vector.extract_strided_slice %22 {offsets = [2, 0], sizes = [1, 32], strides = [1, 1]} : vector<4x32xf32> to vector<1x32xf32>
    %85 = vector.shape_cast %84 : vector<1x32xf32> to vector<1x1x32xf32>
    %86 = vector.extract_strided_slice %42 {offsets = [0, 0, 64], sizes = [8, 8, 32], strides = [1, 1, 1]} : vector<8x8x128xf32> to vector<8x8x32xf32>
    %87 = vector.broadcast %85 : vector<1x1x32xf32> to vector<8x8x32xf32>
    %88 = arith.mulf %86, %87 : vector<8x8x32xf32>
    %cst_42 = arith.constant dense<0.000000e+00> : vector<8x8xf32>
    %89 = vector.multi_reduction <add>, %88, %cst_42 [2] : vector<8x8x32xf32> to vector<8x8xf32>
    %cst_43 = arith.constant -1.000000e+30 : f32
    %90 = vector.broadcast %cst_43 : f32 to vector<8x8xf32>
    %91 = arith.select %3, %89, %90 : vector<8x8xi1>, vector<8x8xf32>
    %cst_44 = arith.constant dense<0xFF800000> : vector<8xf32>
    %92 = vector.multi_reduction <maximumf>, %91, %cst_44 [1] : vector<8x8xf32> to vector<8xf32>
    %93 = vector.shape_cast %92 : vector<8xf32> to vector<8x1xf32>
    %94 = vector.broadcast %93 : vector<8x1xf32> to vector<8x8xf32>
    %95 = arith.subf %91, %94 : vector<8x8xf32>
    %96 = math.exp %95 : vector<8x8xf32>
    %cst_45 = arith.constant dense<0.000000e+00> : vector<8xf32>
    %97 = vector.multi_reduction <add>, %96, %cst_45 [1] : vector<8x8xf32> to vector<8xf32>
    %98 = vector.shape_cast %97 : vector<8xf32> to vector<8x1xf32>
    %99 = vector.broadcast %98 : vector<8x1xf32> to vector<8x8xf32>
    %100 = arith.divf %96, %99 : vector<8x8xf32>
    %101 = vector.extract_strided_slice %28 {offsets = [0, 64], sizes = [8, 32], strides = [1, 1]} : vector<8x128xf32> to vector<8x32xf32>
    %cst_46 = arith.constant dense<0.000000e+00> : vector<8x32xf32>
    %102 = tpu.matmul %100, %101, %cst_46 {dimension_numbers = #tpu.dot_dimension_numbers<[1], [0], [0], [1], [0, 0, 1, 1], [], []>} : vector<8x8xf32>, vector<8x32xf32>, vector<8x32xf32> -> vector<8x32xf32>
    %103 = arith.addf %83, %102 : vector<8x32xf32>
    %104 = vector.extract_strided_slice %22 {offsets = [3, 0], sizes = [1, 32], strides = [1, 1]} : vector<4x32xf32> to vector<1x32xf32>
    %105 = vector.shape_cast %104 : vector<1x32xf32> to vector<1x1x32xf32>
    %106 = vector.extract_strided_slice %42 {offsets = [0, 0, 96], sizes = [8, 8, 32], strides = [1, 1, 1]} : vector<8x8x128xf32> to vector<8x8x32xf32>
    %107 = vector.broadcast %105 : vector<1x1x32xf32> to vector<8x8x32xf32>
    %108 = arith.mulf %106, %107 : vector<8x8x32xf32>
    %cst_47 = arith.constant dense<0.000000e+00> : vector<8x8xf32>
    %109 = vector.multi_reduction <add>, %108, %cst_47 [2] : vector<8x8x32xf32> to vector<8x8xf32>
    %cst_48 = arith.constant -1.000000e+30 : f32
    %110 = vector.broadcast %cst_48 : f32 to vector<8x8xf32>
    %111 = arith.select %3, %109, %110 : vector<8x8xi1>, vector<8x8xf32>
    %cst_49 = arith.constant dense<0xFF800000> : vector<8xf32>
    %112 = vector.multi_reduction <maximumf>, %111, %cst_49 [1] : vector<8x8xf32> to vector<8xf32>
    %113 = vector.shape_cast %112 : vector<8xf32> to vector<8x1xf32>
    %114 = vector.broadcast %113 : vector<8x1xf32> to vector<8x8xf32>
    %115 = arith.subf %111, %114 : vector<8x8xf32>
    %116 = math.exp %115 : vector<8x8xf32>
    %cst_50 = arith.constant dense<0.000000e+00> : vector<8xf32>
    %117 = vector.multi_reduction <add>, %116, %cst_50 [1] : vector<8x8xf32> to vector<8xf32>
    %118 = vector.shape_cast %117 : vector<8xf32> to vector<8x1xf32>
    %119 = vector.broadcast %118 : vector<8x1xf32> to vector<8x8xf32>
    %120 = arith.divf %116, %119 : vector<8x8xf32>
    %121 = vector.extract_strided_slice %28 {offsets = [0, 96], sizes = [8, 32], strides = [1, 1]} : vector<8x128xf32> to vector<8x32xf32>
    %cst_51 = arith.constant dense<0.000000e+00> : vector<8x32xf32>
    %122 = tpu.matmul %120, %121, %cst_51 {dimension_numbers = #tpu.dot_dimension_numbers<[1], [0], [0], [1], [0, 0, 1, 1], [], []>} : vector<8x8xf32>, vector<8x32xf32>, vector<8x32xf32> -> vector<8x32xf32>
    %123 = arith.addf %103, %122 : vector<8x32xf32>
    %cst_52 = arith.constant 2.500000e-01 : f32
    %124 = vector.broadcast %cst_52 : f32 to vector<8x32xf32>
    %125 = arith.mulf %123, %124 : vector<8x32xf32>
    %126 = vector.broadcast %24 : vector<1x32xf32> to vector<8x32xf32>
    %127 = arith.addf %125, %126 : vector<8x32xf32>
    %c1 = arith.constant 1 : index
    %c0_53 = arith.constant 0 : index
    %c0_54 = arith.constant 0 : index
    %128 = vector.load %arg5[%c1, %c0_53, %c0_54] : memref<2x32x256xf32, #tpu.memory_space<vmem>>, vector<1x32x256xf32>
    %129 = vector.shape_cast %128 : vector<1x32x256xf32> to vector<32x256xf32>
    %c1_55 = arith.constant 1 : index
    %c0_56 = arith.constant 0 : index
    %c0_57 = arith.constant 0 : index
    %130 = vector.load %arg6[%c1_55, %c0_56, %c0_57] : memref<2x1x256xf32, #tpu.memory_space<vmem>>, vector<1x1x256xf32>
    %131 = vector.shape_cast %130 : vector<1x1x256xf32> to vector<1x256xf32>
    %c1_58 = arith.constant 1 : index
    %c0_59 = arith.constant 0 : index
    %c0_60 = arith.constant 0 : index
    %132 = vector.load %arg7[%c1_58, %c0_59, %c0_60] : memref<2x4x128xf32, #tpu.memory_space<vmem>>, vector<1x4x128xf32>
    %133 = vector.shape_cast %132 : vector<1x4x128xf32> to vector<4x128xf32>
    %c1_61 = arith.constant 1 : index
    %c0_62 = arith.constant 0 : index
    %c0_63 = arith.constant 0 : index
    %134 = vector.load %arg8[%c1_61, %c0_62, %c0_63] : memref<2x4x32xf32, #tpu.memory_space<vmem>>, vector<1x4x32xf32>
    %135 = vector.shape_cast %134 : vector<1x4x32xf32> to vector<4x32xf32>
    %c1_64 = arith.constant 1 : index
    %c0_65 = arith.constant 0 : index
    %c0_66 = arith.constant 0 : index
    %136 = vector.load %arg9[%c1_64, %c0_65, %c0_66] : memref<2x1x32xf32, #tpu.memory_space<vmem>>, vector<1x1x32xf32>
    %137 = vector.shape_cast %136 : vector<1x1x32xf32> to vector<1x32xf32>
    %cst_67 = arith.constant dense<0.000000e+00> : vector<8x256xf32>
    %138 = tpu.matmul %127, %129, %cst_67 {dimension_numbers = #tpu.dot_dimension_numbers<[1], [0], [0], [1], [0, 0, 1, 1], [], []>} : vector<8x32xf32>, vector<32x256xf32>, vector<8x256xf32> -> vector<8x256xf32>
    %139 = vector.broadcast %131 : vector<1x256xf32> to vector<8x256xf32>
    %140 = arith.addf %138, %139 : vector<8x256xf32>
    %141 = vector.extract_strided_slice %140 {offsets = [0, 0], sizes = [8, 128], strides = [1, 1]} : vector<8x256xf32> to vector<8x128xf32>
    %142 = vector.extract_strided_slice %140 {offsets = [0, 128], sizes = [8, 128], strides = [1, 1]} : vector<8x256xf32> to vector<8x128xf32>
    %cst_68 = arith.constant dense<0.000000e+00> : vector<64x128xf32>
    %143 = tpu.matmul %4, %133, %cst_68 {dimension_numbers = #tpu.dot_dimension_numbers<[1], [0], [0], [1], [0, 0, 1, 1], [], []>} : vector<64x4xf32>, vector<4x128xf32>, vector<64x128xf32> -> vector<64x128xf32>
    %144 = vector.shape_cast %143 : vector<64x128xf32> to vector<8x8x128xf32>
    %145 = vector.shape_cast %141 : vector<8x128xf32> to vector<1x8x128xf32>
    %146 = vector.shape_cast %142 : vector<8x128xf32> to vector<8x1x128xf32>
    %147 = vector.broadcast %145 : vector<1x8x128xf32> to vector<8x8x128xf32>
    %148 = vector.broadcast %146 : vector<8x1x128xf32> to vector<8x8x128xf32>
    %149 = arith.addf %147, %148 : vector<8x8x128xf32>
    %150 = arith.addf %149, %144 : vector<8x8x128xf32>
    %cst_69 = arith.constant 0.000000e+00 : f32
    %151 = vector.broadcast %cst_69 : f32 to vector<8x8x128xf32>
    %152 = arith.cmpf oge, %150, %151 : vector<8x8x128xf32>
    %cst_70 = arith.constant 1.000000e-01 : f32
    %153 = vector.broadcast %cst_70 : f32 to vector<8x8x128xf32>
    %154 = arith.mulf %153, %150 : vector<8x8x128xf32>
    %155 = arith.select %152, %150, %154 : vector<8x8x128xi1>, vector<8x8x128xf32>
    %cst_71 = arith.constant 0.000000e+00 : f32
    %156 = vector.broadcast %cst_71 : f32 to vector<8x32xf32>
    %157 = vector.extract_strided_slice %135 {offsets = [0, 0], sizes = [1, 32], strides = [1, 1]} : vector<4x32xf32> to vector<1x32xf32>
    %158 = vector.shape_cast %157 : vector<1x32xf32> to vector<1x1x32xf32>
    %159 = vector.extract_strided_slice %155 {offsets = [0, 0, 0], sizes = [8, 8, 32], strides = [1, 1, 1]} : vector<8x8x128xf32> to vector<8x8x32xf32>
    %160 = vector.broadcast %158 : vector<1x1x32xf32> to vector<8x8x32xf32>
    %161 = arith.mulf %159, %160 : vector<8x8x32xf32>
    %cst_72 = arith.constant dense<0.000000e+00> : vector<8x8xf32>
    %162 = vector.multi_reduction <add>, %161, %cst_72 [2] : vector<8x8x32xf32> to vector<8x8xf32>
    %cst_73 = arith.constant -1.000000e+30 : f32
    %163 = vector.broadcast %cst_73 : f32 to vector<8x8xf32>
    %164 = arith.select %3, %162, %163 : vector<8x8xi1>, vector<8x8xf32>
    %cst_74 = arith.constant dense<0xFF800000> : vector<8xf32>
    %165 = vector.multi_reduction <maximumf>, %164, %cst_74 [1] : vector<8x8xf32> to vector<8xf32>
    %166 = vector.shape_cast %165 : vector<8xf32> to vector<8x1xf32>
    %167 = vector.broadcast %166 : vector<8x1xf32> to vector<8x8xf32>
    %168 = arith.subf %164, %167 : vector<8x8xf32>
    %169 = math.exp %168 : vector<8x8xf32>
    %cst_75 = arith.constant dense<0.000000e+00> : vector<8xf32>
    %170 = vector.multi_reduction <add>, %169, %cst_75 [1] : vector<8x8xf32> to vector<8xf32>
    %171 = vector.shape_cast %170 : vector<8xf32> to vector<8x1xf32>
    %172 = vector.broadcast %171 : vector<8x1xf32> to vector<8x8xf32>
    %173 = arith.divf %169, %172 : vector<8x8xf32>
    %174 = vector.extract_strided_slice %141 {offsets = [0, 0], sizes = [8, 32], strides = [1, 1]} : vector<8x128xf32> to vector<8x32xf32>
    %cst_76 = arith.constant dense<0.000000e+00> : vector<8x32xf32>
    %175 = tpu.matmul %173, %174, %cst_76 {dimension_numbers = #tpu.dot_dimension_numbers<[1], [0], [0], [1], [0, 0, 1, 1], [], []>} : vector<8x8xf32>, vector<8x32xf32>, vector<8x32xf32> -> vector<8x32xf32>
    %176 = arith.addf %156, %175 : vector<8x32xf32>
    %177 = vector.extract_strided_slice %135 {offsets = [1, 0], sizes = [1, 32], strides = [1, 1]} : vector<4x32xf32> to vector<1x32xf32>
    %178 = vector.shape_cast %177 : vector<1x32xf32> to vector<1x1x32xf32>
    %179 = vector.extract_strided_slice %155 {offsets = [0, 0, 32], sizes = [8, 8, 32], strides = [1, 1, 1]} : vector<8x8x128xf32> to vector<8x8x32xf32>
    %180 = vector.broadcast %178 : vector<1x1x32xf32> to vector<8x8x32xf32>
    %181 = arith.mulf %179, %180 : vector<8x8x32xf32>
    %cst_77 = arith.constant dense<0.000000e+00> : vector<8x8xf32>
    %182 = vector.multi_reduction <add>, %181, %cst_77 [2] : vector<8x8x32xf32> to vector<8x8xf32>
    %cst_78 = arith.constant -1.000000e+30 : f32
    %183 = vector.broadcast %cst_78 : f32 to vector<8x8xf32>
    %184 = arith.select %3, %182, %183 : vector<8x8xi1>, vector<8x8xf32>
    %cst_79 = arith.constant dense<0xFF800000> : vector<8xf32>
    %185 = vector.multi_reduction <maximumf>, %184, %cst_79 [1] : vector<8x8xf32> to vector<8xf32>
    %186 = vector.shape_cast %185 : vector<8xf32> to vector<8x1xf32>
    %187 = vector.broadcast %186 : vector<8x1xf32> to vector<8x8xf32>
    %188 = arith.subf %184, %187 : vector<8x8xf32>
    %189 = math.exp %188 : vector<8x8xf32>
    %cst_80 = arith.constant dense<0.000000e+00> : vector<8xf32>
    %190 = vector.multi_reduction <add>, %189, %cst_80 [1] : vector<8x8xf32> to vector<8xf32>
    %191 = vector.shape_cast %190 : vector<8xf32> to vector<8x1xf32>
    %192 = vector.broadcast %191 : vector<8x1xf32> to vector<8x8xf32>
    %193 = arith.divf %189, %192 : vector<8x8xf32>
    %194 = vector.extract_strided_slice %141 {offsets = [0, 32], sizes = [8, 32], strides = [1, 1]} : vector<8x128xf32> to vector<8x32xf32>
    %cst_81 = arith.constant dense<0.000000e+00> : vector<8x32xf32>
    %195 = tpu.matmul %193, %194, %cst_81 {dimension_numbers = #tpu.dot_dimension_numbers<[1], [0], [0], [1], [0, 0, 1, 1], [], []>} : vector<8x8xf32>, vector<8x32xf32>, vector<8x32xf32> -> vector<8x32xf32>
    %196 = arith.addf %176, %195 : vector<8x32xf32>
    %197 = vector.extract_strided_slice %135 {offsets = [2, 0], sizes = [1, 32], strides = [1, 1]} : vector<4x32xf32> to vector<1x32xf32>
    %198 = vector.shape_cast %197 : vector<1x32xf32> to vector<1x1x32xf32>
    %199 = vector.extract_strided_slice %155 {offsets = [0, 0, 64], sizes = [8, 8, 32], strides = [1, 1, 1]} : vector<8x8x128xf32> to vector<8x8x32xf32>
    %200 = vector.broadcast %198 : vector<1x1x32xf32> to vector<8x8x32xf32>
    %201 = arith.mulf %199, %200 : vector<8x8x32xf32>
    %cst_82 = arith.constant dense<0.000000e+00> : vector<8x8xf32>
    %202 = vector.multi_reduction <add>, %201, %cst_82 [2] : vector<8x8x32xf32> to vector<8x8xf32>
    %cst_83 = arith.constant -1.000000e+30 : f32
    %203 = vector.broadcast %cst_83 : f32 to vector<8x8xf32>
    %204 = arith.select %3, %202, %203 : vector<8x8xi1>, vector<8x8xf32>
    %cst_84 = arith.constant dense<0xFF800000> : vector<8xf32>
    %205 = vector.multi_reduction <maximumf>, %204, %cst_84 [1] : vector<8x8xf32> to vector<8xf32>
    %206 = vector.shape_cast %205 : vector<8xf32> to vector<8x1xf32>
    %207 = vector.broadcast %206 : vector<8x1xf32> to vector<8x8xf32>
    %208 = arith.subf %204, %207 : vector<8x8xf32>
    %209 = math.exp %208 : vector<8x8xf32>
    %cst_85 = arith.constant dense<0.000000e+00> : vector<8xf32>
    %210 = vector.multi_reduction <add>, %209, %cst_85 [1] : vector<8x8xf32> to vector<8xf32>
    %211 = vector.shape_cast %210 : vector<8xf32> to vector<8x1xf32>
    %212 = vector.broadcast %211 : vector<8x1xf32> to vector<8x8xf32>
    %213 = arith.divf %209, %212 : vector<8x8xf32>
    %214 = vector.extract_strided_slice %141 {offsets = [0, 64], sizes = [8, 32], strides = [1, 1]} : vector<8x128xf32> to vector<8x32xf32>
    %cst_86 = arith.constant dense<0.000000e+00> : vector<8x32xf32>
    %215 = tpu.matmul %213, %214, %cst_86 {dimension_numbers = #tpu.dot_dimension_numbers<[1], [0], [0], [1], [0, 0, 1, 1], [], []>} : vector<8x8xf32>, vector<8x32xf32>, vector<8x32xf32> -> vector<8x32xf32>
    %216 = arith.addf %196, %215 : vector<8x32xf32>
    %217 = vector.extract_strided_slice %135 {offsets = [3, 0], sizes = [1, 32], strides = [1, 1]} : vector<4x32xf32> to vector<1x32xf32>
    %218 = vector.shape_cast %217 : vector<1x32xf32> to vector<1x1x32xf32>
    %219 = vector.extract_strided_slice %155 {offsets = [0, 0, 96], sizes = [8, 8, 32], strides = [1, 1, 1]} : vector<8x8x128xf32> to vector<8x8x32xf32>
    %220 = vector.broadcast %218 : vector<1x1x32xf32> to vector<8x8x32xf32>
    %221 = arith.mulf %219, %220 : vector<8x8x32xf32>
    %cst_87 = arith.constant dense<0.000000e+00> : vector<8x8xf32>
    %222 = vector.multi_reduction <add>, %221, %cst_87 [2] : vector<8x8x32xf32> to vector<8x8xf32>
    %cst_88 = arith.constant -1.000000e+30 : f32
    %223 = vector.broadcast %cst_88 : f32 to vector<8x8xf32>
    %224 = arith.select %3, %222, %223 : vector<8x8xi1>, vector<8x8xf32>
    %cst_89 = arith.constant dense<0xFF800000> : vector<8xf32>
    %225 = vector.multi_reduction <maximumf>, %224, %cst_89 [1] : vector<8x8xf32> to vector<8xf32>
    %226 = vector.shape_cast %225 : vector<8xf32> to vector<8x1xf32>
    %227 = vector.broadcast %226 : vector<8x1xf32> to vector<8x8xf32>
    %228 = arith.subf %224, %227 : vector<8x8xf32>
    %229 = math.exp %228 : vector<8x8xf32>
    %cst_90 = arith.constant dense<0.000000e+00> : vector<8xf32>
    %230 = vector.multi_reduction <add>, %229, %cst_90 [1] : vector<8x8xf32> to vector<8xf32>
    %231 = vector.shape_cast %230 : vector<8xf32> to vector<8x1xf32>
    %232 = vector.broadcast %231 : vector<8x1xf32> to vector<8x8xf32>
    %233 = arith.divf %229, %232 : vector<8x8xf32>
    %234 = vector.extract_strided_slice %141 {offsets = [0, 96], sizes = [8, 32], strides = [1, 1]} : vector<8x128xf32> to vector<8x32xf32>
    %cst_91 = arith.constant dense<0.000000e+00> : vector<8x32xf32>
    %235 = tpu.matmul %233, %234, %cst_91 {dimension_numbers = #tpu.dot_dimension_numbers<[1], [0], [0], [1], [0, 0, 1, 1], [], []>} : vector<8x8xf32>, vector<8x32xf32>, vector<8x32xf32> -> vector<8x32xf32>
    %236 = arith.addf %216, %235 : vector<8x32xf32>
    %cst_92 = arith.constant 2.500000e-01 : f32
    %237 = vector.broadcast %cst_92 : f32 to vector<8x32xf32>
    %238 = arith.mulf %236, %237 : vector<8x32xf32>
    %239 = vector.broadcast %137 : vector<1x32xf32> to vector<8x32xf32>
    %240 = arith.addf %238, %239 : vector<8x32xf32>
    %c0_93 = arith.constant 0 : index
    %c0_94 = arith.constant 0 : index
    %241 = vector.load %arg10[%c0_93, %c0_94] : memref<32x8xf32, #tpu.memory_space<vmem>>, vector<32x8xf32>
    %cst_95 = arith.constant dense<0.000000e+00> : vector<8x8xf32>
    %242 = tpu.matmul %240, %241, %cst_95 {dimension_numbers = #tpu.dot_dimension_numbers<[1], [0], [0], [1], [0, 0, 1, 1], [], []>} : vector<8x32xf32>, vector<32x8xf32>, vector<8x8xf32> -> vector<8x8xf32>
    %c0_96 = arith.constant 0 : index
    %c0_97 = arith.constant 0 : index
    %243 = vector.load %arg11[%c0_96, %c0_97] : memref<1x8xf32, #tpu.memory_space<vmem>>, vector<1x8xf32>
    %244 = vector.broadcast %243 : vector<1x8xf32> to vector<8x8xf32>
    %245 = arith.addf %242, %244 : vector<8x8xf32>
    %cst_98 = arith.constant 0.000000e+00 : f32
    %246 = vector.broadcast %cst_98 : f32 to vector<8x8xf32>
    %247 = arith.cmpf oge, %245, %246 : vector<8x8xf32>
    %cst_99 = arith.constant 1.000000e-01 : f32
    %248 = vector.broadcast %cst_99 : f32 to vector<8x8xf32>
    %249 = arith.mulf %248, %245 : vector<8x8xf32>
    %250 = arith.select %247, %245, %249 : vector<8x8xi1>, vector<8x8xf32>
    %c0_100 = arith.constant 0 : index
    %c0_101 = arith.constant 0 : index
    %251 = vector.load %arg12[%c0_100, %c0_101] : memref<8x8xf32, #tpu.memory_space<vmem>>, vector<8x8xf32>
    tpu.vector_store %arg12[%c0_100, %c0_101], %250 {strides = array<i32>} : memref<8x8xf32, #tpu.memory_space<vmem>>, vector<8x8xf32>,
    return
  }
}

</mosaic_0001>

<llo_original>
// kernel: graph_attention_block_forward.1
$region0: #{graph_attention_block_forward.1}
  #allocation0 [shape = 'u32[]', space=smem, size = 0x4, offset = 0x4, fixed_abs, tag = 'smem constant byte address 0x4 - core index']
  #allocation1 [shape = 'u32[144,128]{1,0:T(1,128)}', space=vmem, size = 0x12000, scoped, tag = 'internal scratch']
  %s0 = inlined_call_operand.vmem [shape: f32[8,16], index: 0, kind: input, shape index: {}]
  %s1 = inlined_call_operand.vmem [shape: f32[8,8], index: 1, kind: input, shape index: {}]
  %s2 = inlined_call_operand.vmem [shape: f32[64,4], index: 2, kind: input, shape index: {}]
  %s3 = inlined_call_operand.vmem [shape: f32[16,32], index: 3, kind: input, shape index: {}]
  %s4 = inlined_call_operand.vmem [shape: f32[1,32], index: 4, kind: input, shape index: {}]
  %s5 = inlined_call_operand.vmem [shape: f32[2,32,256], index: 5, kind: input, shape index: {}]
  %s6 = inlined_call_operand.vmem [shape: f32[2,1,256], index: 6, kind: input, shape index: {}]
  %s7 = inlined_call_operand.vmem [shape: f32[2,4,128], index: 7, kind: input, shape index: {}]
  %s8 = inlined_call_operand.vmem [shape: f32[2,4,32], index: 8, kind: input, shape index: {}]
  %s9 = inlined_call_operand.vmem [shape: f32[2,1,32], index: 9, kind: input, shape index: {}]
  %s10 = inlined_call_operand.vmem [shape: f32[32,8], index: 10, kind: input, shape index: {}]
  %s11 = inlined_call_operand.vmem [shape: f32[1,8], index: 11, kind: input, shape index: {}]
  %s12 = inlined_call_operand.hbm [shape: f32[8,8], index: 12, kind: output, shape index: {}]
  %s13 = sld [smem:[#allocation0]]
  $region58: #{graph_attention_block_forward.1} parent=0
    _
  %s15 = ssub.s32 1, %s13
  %s16 = scalar_select 0, %s15, %s13
  $region1: #{graph_attention_block_forward.1} parent=0
    #allocation2 [shape = 'u8[4096]{0}', space=vmem, size = 0x1000, scoped, tag = 'output window, operand 0, single buffered']
    #allocation3 [shape = 's32[1]{0}', space=sflag, size = 0x4, scoped, tag = 'scoped memory for graph_attention_block_forward.1']
    %17 = vsyncpa [#allocation3], 0
    // Predicated region
    $region2: #{graph_attention_block_forward.1} parent=1 // pred_check
      _
    $region3: #{graph_attention_block_forward.1} parent=1 // pred_check_branch
      %19 = sbr.rel (0) target = $region5
    $region4: #{graph_attention_block_forward.1} parent=1 // pred_region
      _
    $region5: #{graph_attention_block_forward.1} parent=1 // pred_fallthru
      _
    // Predicated region
    $region6: #{graph_attention_block_forward.1} parent=1 // pred_check
      _
    $region7: #{graph_attention_block_forward.1} parent=1 // pred_check_branch
      %21 = sbr.rel (0) target = $region9
    $region8: #{graph_attention_block_forward.1} parent=1 // pred_region
      _
    $region9: #{graph_attention_block_forward.1} parent=1 // pred_fallthru
      _
    // Predicated region
    $region10: #{graph_attention_block_forward.1} parent=1 // pred_check
      _
    $region11: #{graph_attention_block_forward.1} parent=1 // pred_check_branch
      %23 = sbr.rel (0) target = $region13
    $region12: #{graph_attention_block_forward.1} parent=1 // pred_region
      _
    $region13: #{graph_attention_block_forward.1} parent=1 // pred_fallthru
      _
    // Predicated region
    $region14: #{graph_attention_block_forward.1} parent=1 // pred_check
      _
    $region15: #{graph_attention_block_forward.1} parent=1 // pred_check_branch
      %25 = sbr.rel (0) target = $region17
    $region16: #{graph_attention_block_forward.1} parent=1 // pred_region
      _
    $region17: #{graph_attention_block_forward.1} parent=1 // pred_fallthru
      _
    // Predicated region
    $region18: #{graph_attention_block_forward.1} parent=1 // pred_check
      _
    $region19: #{graph_attention_block_forward.1} parent=1 // pred_check_branch
      %27 = sbr.rel (0) target = $region21
    $region20: #{graph_attention_block_forward.1} parent=1 // pred_region
      _
    $region21: #{graph_attention_block_forward.1} parent=1 // pred_fallthru
      _
    // Predicated region
    $region22: #{graph_attention_block_forward.1} parent=1 // pred_check
      _
    $region23: #{graph_attention_block_forward.1} parent=1 // pred_check_branch
      %29 = sbr.rel (0) target = $region25
    $region24: #{graph_attention_block_forward.1} parent=1 // pred_region
      _
    $region25: #{graph_attention_block_forward.1} parent=1 // pred_fallthru
      _
    // Predicated region
    $region26: #{graph_attention_block_forward.1} parent=1 // pred_check
      _
    $region27: #{graph_attention_block_forward.1} parent=1 // pred_check_branch
      %31 = sbr.rel (0) target = $region29
    $region28: #{graph_attention_block_forward.1} parent=1 // pred_region
      _
    $region29: #{graph_attention_block_forward.1} parent=1 // pred_fallthru
      _
    // Predicated region
    $region30: #{graph_attention_block_forward.1} parent=1 // pred_check
      _
    $region31: #{graph_attention_block_forward.1} parent=1 // pred_check_branch
      %33 = sbr.rel (0) target = $region33
    $region32: #{graph_attention_block_forward.1} parent=1 // pred_region
      _
    $region33: #{graph_attention_block_forward.1} parent=1 // pred_fallthru
      _
    // Predicated region
    $region34: #{graph_attention_block_forward.1} parent=1 // pred_check
      _
    $region35: #{graph_attention_block_forward.1} parent=1 // pred_check_branch
      %35 = sbr.rel (0) target = $region37
    $region36: #{graph_attention_block_forward.1} parent=1 // pred_region
      _
    $region37: #{graph_attention_block_forward.1} parent=1 // pred_fallthru
      _
    // Predicated region
    $region38: #{graph_attention_block_forward.1} parent=1 // pred_check
      _
    $region39: #{graph_attention_block_forward.1} parent=1 // pred_check_branch
      %37 = sbr.rel (0) target = $region41
    $region40: #{graph_attention_block_forward.1} parent=1 // pred_region
      _
    $region41: #{graph_attention_block_forward.1} parent=1 // pred_fallthru
      _
    // Predicated region
    $region42: #{graph_attention_block_forward.1} parent=1 // pred_check
      _
    $region43: #{graph_attention_block_forward.1} parent=1 // pred_check_branch
      %39 = sbr.rel (0) target = $region45
    $region44: #{graph_attention_block_forward.1} parent=1 // pred_region
      _
    $region45: #{graph_attention_block_forward.1} parent=1 // pred_fallthru
      _
    // Predicated region
    $region46: #{graph_attention_block_forward.1} parent=1 // pred_check
      _
    $region47: #{graph_attention_block_forward.1} parent=1 // pred_check_branch
      %41 = sbr.rel (0) target = $region49
    $region48: #{graph_attention_block_forward.1} parent=1 // pred_region
      _
    $region49: #{graph_attention_block_forward.1} parent=1 // pred_fallthru
      _
    %v42 = vld [vmem:[%s0] sm:$0xff]
    %v43 = vld [vmem:[%s1] sm:$0xff]
    %vm44 = vcmp.gt.f32.partialorder %v43, 0.0
    %v45 = vld [vmem:[%s2] sm:$0xff]
    %v46 = vld [vmem:[%s2 + $0x8] sm:$0xff]
    %v47 = vld [vmem:[%s2 + $0x10] sm:$0xff]
    %v48 = vld [vmem:[%s2 + $0x18] sm:$0xff]
    %v49 = vld [vmem:[%s2 + $0x20] sm:$0xff]
    %v50 = vld [vmem:[%s2 + $0x28] sm:$0xff]
    %v51 = vld [vmem:[%s2 + $0x30] sm:$0xff]
    %v52 = vld [vmem:[%s2 + $0x38] sm:$0xff]
    %v53 = vld [vmem:[%s3] sm:$0xff]
    %v54 = vld [vmem:[%s3 + $0x8] sm:$0xff]
    %v55 = vld [vmem:[%s4] sm:$0x1]
    %v57 = vlaneseq
    %v58 = vshrl.u32 %v57, 7
    %v59 = vsub.s32 0, %v58
    %v60 = vrot.slane %v55, %v59
    %vm62 = vcmask 130048
    %v64 = vsel %vm62, %v42, 0
    %66 = vmatprep.subr.mxu0 0.0
    %67 = vmatpush1.msra.mxu0 %v53
    %68 = vmatprep.subr.mxu0 0.0
    %69 = vmatpush1.msra.mxu0 %v54
    %70 = vmatprep.subr.mxu0 0.0
    %71 = vmatpush1.msra.mxu0 0.0
    %72 = vmatprep.subr.mxu0 0.0
    %73 = vmatpush1.msra.mxu0 0.0
    %74 = vmatprep.subr.mxu0 0.0
    %75 = vmatpush1.msra.mxu0 0.0
    %76 = vmatprep.subr.mxu0 0.0
    %77 = vmatpush1.msra.mxu0 0.0
    %78 = vmatprep.subr.mxu0 0.0
    %79 = vmatpush1.msra.mxu0 0.0
    %80 = vmatprep.subr.mxu0 0.0
    %81 = vmatpush1.msra.mxu0 0.0
    %82 = vmatprep.subr.mxu0 0.0
    %83 = vmatpush1.msra.mxu0 0.0
    %84 = vmatprep.subr.mxu0 0.0
    %85 = vmatpush1.msra.mxu0 0.0
    %86 = vmatprep.subr.mxu0 0.0
    %87 = vmatpush1.msra.mxu0 0.0
    %88 = vmatprep.subr.mxu0 0.0
    %89 = vmatpush1.msra.mxu0 0.0
    %90 = vmatprep.subr.mxu0 0.0
    %91 = vmatpush1.msra.mxu0 0.0
    %92 = vmatprep.subr.mxu0 0.0
    %93 = vmatpush1.msra.mxu0 0.0
    %94 = vmatprep.subr.mxu0 0.0
    %95 = vmatpush1.msra.mxu0 0.0
    %96 = vmatprep.subr.mxu0 0.0
    %97 = vmatpush1.msra.mxu0 0.0
    %98 = vmatprep.subr.mxu0 0.0
    %99 = vmatpush1.msra.mxu0 0.0
    %100 = vmatprep.subr.mxu0 0.0
    %101 = vmatpush1.msra.mxu0 0.0
    %102 = vmatprep.subr.mxu0 0.0
    %103 = vmatpush1.msra.mxu0 0.0
    %104 = vmatprep.subr.mxu0 0.0
    %105 = vmatpush1.msra.mxu0 0.0
    %106 = vmatprep.subr.mxu0 0.0
    %107 = vmatpush1.msra.mxu0 0.0
    %108 = vmatprep.subr.mxu0 0.0
    %109 = vmatpush1.msra.mxu0 0.0
    %110 = vmatprep.subr.mxu0 0.0
    %111 = vmatpush1.msra.mxu0 0.0
    %112 = vmatprep.subr.mxu0 0.0
    %113 = vmatpush1.msra.mxu0 0.0
    %114 = vmatprep.subr.mxu0 0.0
    %115 = vmatpush1.msra.mxu0 0.0
    %116 = vmatprep.subr.mxu0 0.0
    %117 = vmatpush1.msra.mxu0 0.0
    %118 = vmatprep.subr.mxu0 0.0
    %119 = vmatpush1.msra.mxu0 0.0
    %120 = vmatprep.subr.mxu0 0.0
    %121 = vmatpush1.msra.mxu0 0.0
    %122 = vmatprep.subr.mxu0 0.0
    %123 = vmatpush1.msra.mxu0 0.0
    %124 = vmatprep.subr.mxu0 0.0
    %125 = vmatpush1.msra.mxu0 0.0
    %126 = vmatprep.subr.mxu0 0.0
    %127 = vmatpush1.msra.mxu0 0.0
    %128 = vmatprep.subr.mxu0 0.0
    %129 = vmatpush1.msra.mxu0 0.0
    %130 = vmatprep.mubr.f32.mxu0 0.0
    %131 = vmatmul.mubr.f32.gmra.mrb[0].mxu0 %v64
    %v132 = vpop.f32.mrb[0].mxu0
    %v133 = vadd.f32 %v60, %v132
    %v134 = vpop.f32.mrb[0].mxu0
    %135 = vdwg.mxu0
    %vm136 = vcmp.ge.f32.partialorder %v133, 0.0
    %v137 = vmul.f32 %v133, 0.1
    %v138 = vsel %vm136, %v133, %v137
    %v139 = vld [vmem:[%s5] sm:$0xff]
    %v140 = vld [vmem:[%s5 + $0x8] sm:$0xff]
    %v141 = vld [vmem:[%s5 + $0x10] sm:$0xff]
    %v142 = vld [vmem:[%s5 + $0x18] sm:$0xff]
    %v143 = vld [vmem:[%s5 + $0x20] sm:$0xff]
    %v144 = vld [vmem:[%s5 + $0x28] sm:$0xff]
    %v145 = vld [vmem:[%s5 + $0x30] sm:$0xff]
    %v146 = vld [vmem:[%s5 + $0x38] sm:$0xff]
    %v147 = vld [vmem:[%s6] sm:$0x3]
    %v148 = vld [vmem:[%s7] sm:$0xf]
    %v149 = vld [vmem:[%s8] sm:$0xf]
    %v150 = vld [vmem:[%s9] sm:$0x1]
    %v152 = vlaneseq
    %v153 = vshrl.u32 %v152, 7
    %v154 = vsub.s32 0, %v153
    %v155 = vrot.slane %v147, %v154
    %v156 = vlaneseq
    %v157 = vshrl.u32 %v156, 7
    %v158 = vsub.s32 1, %v157
    %v159 = vrot.slane %v147, %v158
    %vm162 = vcmask 261120
    %v164 = vsel %vm162, %v138, 0
    %166 = vmatprep.subr.mxu0 %v140
    %167 = vmatpush1.msra.mxu0 %v139
    %168 = vmatprep.subr.mxu0 %v142
    %169 = vmatpush1.msra.mxu0 %v141
    %170 = vmatprep.subr.mxu0 %v144
    %171 = vmatpush1.msra.mxu0 %v143
    %172 = vmatprep.subr.mxu0 %v146
    %173 = vmatpush1.msra.mxu0 %v145
    %174 = vmatprep.subr.mxu0 0.0
    %175 = vmatpush1.msra.mxu0 0.0
    %176 = vmatprep.subr.mxu0 0.0
    %177 = vmatpush1.msra.mxu0 0.0
    %178 = vmatprep.subr.mxu0 0.0
    %179 = vmatpush1.msra.mxu0 0.0
    %180 = vmatprep.subr.mxu0 0.0
    %181 = vmatpush1.msra.mxu0 0.0
    %182 = vmatprep.subr.mxu0 0.0
    %183 = vmatpush1.msra.mxu0 0.0
    %184 = vmatprep.subr.mxu0 0.0
    %185 = vmatpush1.msra.mxu0 0.0
    %186 = vmatprep.subr.mxu0 0.0
    %187 = vmatpush1.msra.mxu0 0.0
    %188 = vmatprep.subr.mxu0 0.0
    %189 = vmatpush1.msra.mxu0 0.0
    %190 = vmatprep.subr.mxu0 0.0
    %191 = vmatpush1.msra.mxu0 0.0
    %192 = vmatprep.subr.mxu0 0.0
    %193 = vmatpush1.msra.mxu0 0.0
    %194 = vmatprep.subr.mxu0 0.0
    %195 = vmatpush1.msra.mxu0 0.0
    %196 = vmatprep.subr.mxu0 0.0
    %197 = vmatpush1.msra.mxu0 0.0
    %198 = vmatprep.subr.mxu0 0.0
    %199 = vmatpush1.msra.mxu0 0.0
    %200 = vmatprep.subr.mxu0 0.0
    %201 = vmatpush1.msra.mxu0 0.0
    %202 = vmatprep.subr.mxu0 0.0
    %203 = vmatpush1.msra.mxu0 0.0
    %204 = vmatprep.subr.mxu0 0.0
    %205 = vmatpush1.msra.mxu0 0.0
    %206 = vmatprep.subr.mxu0 0.0
    %207 = vmatpush1.msra.mxu0 0.0
    %208 = vmatprep.subr.mxu0 0.0
    %209 = vmatpush1.msra.mxu0 0.0
    %210 = vmatprep.subr.mxu0 0.0
    %211 = vmatpush1.msra.mxu0 0.0
    %212 = vmatprep.subr.mxu0 0.0
    %213 = vmatpush1.msra.mxu0 0.0
    %214 = vmatprep.subr.mxu0 0.0
    %215 = vmatpush1.msra.mxu0 0.0
    %216 = vmatprep.subr.mxu0 0.0
    %217 = vmatpush1.msra.mxu0 0.0
    %218 = vmatprep.subr.mxu0 0.0
    %219 = vmatpush1.msra.mxu0 0.0
    %220 = vmatprep.subr.mxu0 0.0
    %221 = vmatpush1.msra.mxu0 0.0
    %222 = vmatprep.subr.mxu0 0.0
    %223 = vmatpush1.msra.mxu0 0.0
    %224 = vmatprep.subr.mxu0 0.0
    %225 = vmatpush1.msra.mxu0 0.0
    %226 = vmatprep.subr.mxu0 0.0
    %227 = vmatpush1.msra.mxu0 0.0
    %228 = vmatprep.subr.mxu0 0.0
    %229 = vmatpush1.msra.mxu0 0.0
    %230 = vmatprep.mubr.f32.mxu0 0.0
    %231 = vmatmul.mubr.f32.gmra.mrb[0].mxu0 %v164
    %v232 = vpop.f32.mrb[0].mxu0
    %v233 = vadd.f32 %v155, %v232
    %v234 = vpop.f32.mrb[0].mxu0
    %v235 = vadd.f32 %v159, %v234
    %236 = vdwg.mxu0
    %vm237 = vcmask 31744
    %v239 = vsel %vm237, %v45, 0
    %v242 = vsel %vm237, %v46, 0
    %v245 = vsel %vm237, %v47, 0
    %v248 = vsel %vm237, %v48, 0
    %v251 = vsel %vm237, %v49, 0
    %v254 = vsel %vm237, %v50, 0
    %v257 = vsel %vm237, %v51, 0
    %v260 = vsel %vm237, %v52, 0
    %vm262 = vcmask 1043456
    %v264 = vsel %vm262, %v148, 0
    %266 = vmatprep.subr.mxu0 0.0
    %267 = vmatpush1.msra.mxu0 %v264
    %268 = vmatprep.subr.mxu0 0.0
    %269 = vmatpush1.msra.mxu0 0.0
    %270 = vmatprep.subr.mxu0 0.0
    %271 = vmatpush1.msra.mxu0 0.0
    %272 = vmatprep.subr.mxu0 0.0
    %273 = vmatpush1.msra.mxu0 0.0
    %274 = vmatprep.subr.mxu0 0.0
    %275 = vmatpush1.msra.mxu0 0.0
    %276 = vmatprep.subr.mxu0 0.0
    %277 = vmatpush1.msra.mxu0 0.0
    %278 = vmatprep.subr.mxu0 0.0
    %279 = vmatpush1.msra.mxu0 0.0
    %280 = vmatprep.subr.mxu0 0.0
    %281 = vmatpush1.msra.mxu0 0.0
    %282 = vmatprep.subr.mxu0 0.0
    %283 = vmatpush1.msra.mxu0 0.0
    %284 = vmatprep.subr.mxu0 0.0
    %285 = vmatpush1.msra.mxu0 0.0
    %286 = vmatprep.subr.mxu0 0.0
    %287 = vmatpush1.msra.mxu0 0.0
    %288 = vmatprep.subr.mxu0 0.0
    %289 = vmatpush1.msra.mxu0 0.0
    %290 = vmatprep.subr.mxu0 0.0
    %291 = vmatpush1.msra.mxu0 0.0
    %292 = vmatprep.subr.mxu0 0.0
    %293 = vmatpush1.msra.mxu0 0.0
    %294 = vmatprep.subr.mxu0 0.0
    %295 = vmatpush1.msra.mxu0 0.0
    %296 = vmatprep.subr.mxu0 0.0
    %297 = vmatpush1.msra.mxu0 0.0
    %298 = vmatprep.subr.mxu0 0.0
    %299 = vmatpush1.msra.mxu0 0.0
    %300 = vmatprep.subr.mxu0 0.0
    %301 = vmatpush1.msra.mxu0 0.0
    %302 = vmatprep.subr.mxu0 0.0
    %303 = vmatpush1.msra.mxu0 0.0
    %304 = vmatprep.subr.mxu0 0.0
    %305 = vmatpush1.msra.mxu0 0.0
    %306 = vmatprep.subr.mxu0 0.0
    %307 = vmatpush1.msra.mxu0 0.0
    %308 = vmatprep.subr.mxu0 0.0
    %309 = vmatpush1.msra.mxu0 0.0
    %310 = vmatprep.subr.mxu0 0.0
    %311 = vmatpush1.msra.mxu0 0.0
    %312 = vmatprep.subr.mxu0 0.0
    %313 = vmatpush1.msra.mxu0 0.0
    %314 = vmatprep.subr.mxu0 0.0
    %315 = vmatpush1.msra.mxu0 0.0
    %316 = vmatprep.subr.mxu0 0.0
    %317 = vmatpush1.msra.mxu0 0.0
    %318 = vmatprep.subr.mxu0 0.0
    %319 = vmatpush1.msra.mxu0 0.0
    %320 = vmatprep.subr.mxu0 0.0
    %321 = vmatpush1.msra.mxu0 0.0
    %322 = vmatprep.subr.mxu0 0.0
    %323 = vmatpush1.msra.mxu0 0.0
    %324 = vmatprep.subr.mxu0 0.0
    %325 = vmatpush1.msra.mxu0 0.0
    %326 = vmatprep.subr.mxu0 0.0
    %327 = vmatpush1.msra.mxu0 0.0
    %328 = vmatprep.subr.mxu0 0.0
    %329 = vmatpush1.msra.mxu0 0.0
    %330 = vmatprep.mubr.f32.mxu0 0.0
    %331 = vmatmul.mubr.f32.gmra.mrb[0].mxu0 %v239
    %v332 = vpop.f32.mrb[0].mxu0
    %v333 = vadd.f32 0.0, %v332
    %v334 = vpop.f32.mrb[0].mxu0
    %335 = vmatprep.mubr.f32.mxu0 0.0
    %336 = vmatmul.mubr.f32.gmra.mrb[0].mxu0 %v242
    %v337 = vpop.f32.mrb[0].mxu0
    %v338 = vadd.f32 0.0, %v337
    %v339 = vpop.f32.mrb[0].mxu0
    %340 = vmatprep.mubr.f32.mxu0 0.0
    %341 = vmatmul.mubr.f32.gmra.mrb[0].mxu0 %v245
    %v342 = vpop.f32.mrb[0].mxu0
    %v343 = vadd.f32 0.0, %v342
    %v344 = vpop.f32.mrb[0].mxu0
    %345 = vmatprep.mubr.f32.mxu0 0.0
    %346 = vmatmul.mubr.f32.gmra.mrb[0].mxu0 %v248
    %v347 = vpop.f32.mrb[0].mxu0
    %v348 = vadd.f32 0.0, %v347
    %v349 = vpop.f32.mrb[0].mxu0
    %350 = vmatprep.mubr.f32.mxu0 0.0
    %351 = vmatmul.mubr.f32.gmra.mrb[0].mxu0 %v251
    %v352 = vpop.f32.mrb[0].mxu0
    %v353 = vadd.f32 0.0, %v352
    %v354 = vpop.f32.mrb[0].mxu0
    %355 = vmatprep.mubr.f32.mxu0 0.0
    %356 = vmatmul.mubr.f32.gmra.mrb[0].mxu0 %v254
    %v357 = vpop.f32.mrb[0].mxu0
    %v358 = vadd.f32 0.0, %v357
    %v359 = vpop.f32.mrb[0].mxu0
    %360 = vmatprep.mubr.f32.mxu0 0.0
    %361 = vmatmul.mubr.f32.gmra.mrb[0].mxu0 %v257
    %v362 = vpop.f32.mrb[0].mxu0
    %v363 = vadd.f32 0.0, %v362
    %v364 = vpop.f32.mrb[0].mxu0
    %365 = vmatprep.mubr.f32.mxu0 0.0
    %366 = vmatmul.mubr.f32.gmra.mrb[0].mxu0 %v260
    %v367 = vpop.f32.mrb[0].mxu0
    %v368 = vadd.f32 0.0, %v367
    %v369 = vpop.f32.mrb[0].mxu0
    %370 = vdwg.mxu0
    %v372 = vcombine.high %v235, %v235
    %v374 = vunpack.c.l.s4 1966171168
    %v375 = vunpack.c.0.s8 %v374
    %v376 = vlaneseq
    %v377 = vshrl.u32 %v376, 7
    %v378 = vsub.s32 %v375, %v377
    %v379 = vrot.slane %v235, %v378
    %v381 = vunpack.c.l.s4 1966171168
    %v382 = vunpack.c.0.s8 %v381
    %v383 = vlaneseq
    %v384 = vshrl.u32 %v383, 7
    %v385 = vsub.s32 %v382, %v384
    %v386 = vrot.slane %v372, %v385
    %v387 = vcombine.high %v379, %v379
    %v388 = vcombine.high %v386, %v386
    %v390 = vunpack.c.l.s4 1966171168
    %v391 = vunpack.c.0.s8 %v390
    %v392 = vlaneseq
    %v393 = vshrl.u32 %v392, 7
    %v394 = vsub.s32 %v391, %v393
    %v395 = vrot.slane %v379, %v394
    %v397 = vunpack.c.l.s4 1966171168
    %v398 = vunpack.c.0.s8 %v397
    %v399 = vlaneseq
    %v400 = vshrl.u32 %v399, 7
    %v401 = vsub.s32 %v398, %v400
    %v402 = vrot.slane %v386, %v401
    %v404 = vunpack.c.l.s4 1966171168
    %v405 = vunpack.c.0.s8 %v404
    %v406 = vlaneseq
    %v407 = vshrl.u32 %v406, 7
    %v408 = vsub.s32 %v405, %v407
    %v409 = vrot.slane %v387, %v408
    %v411 = vunpack.c.l.s4 1966171168
    %v412 = vunpack.c.0.s8 %v411
    %v413 = vlaneseq
    %v414 = vshrl.u32 %v413, 7
    %v415 = vsub.s32 %v412, %v414
    %v416 = vrot.slane %v388, %v415
    %v417 = vcombine.high %v395, %v395
    %v418 = vcombine.high %v402, %v402
    %v419 = vcombine.high %v409, %v409
    %v420 = vcombine.high %v416, %v416
    %v421 = vlaneseq
    %v422 = vshrl.u32 %v421, 7
    %v423 = vsub.s32 0, %v422
    %v424 = vrot.slane %v395, %v423
    %v425 = vlaneseq
    %v426 = vshrl.u32 %v425, 7
    %v427 = vsub.s32 0, %v426
    %v428 = vrot.slane %v409, %v427
    %v429 = vlaneseq
    %v430 = vshrl.u32 %v429, 7
    %v431 = vsub.s32 0, %v430
    %v432 = vrot.slane %v417, %v431
    %v433 = vlaneseq
    %v434 = vshrl.u32 %v433, 7
    %v435 = vsub.s32 0, %v434
    %v436 = vrot.slane %v419, %v435
    %v437 = vlaneseq
    %v438 = vshrl.u32 %v437, 7
    %v439 = vsub.s32 0, %v438
    %v440 = vrot.slane %v402, %v439
    %v441 = vlaneseq
    %v442 = vshrl.u32 %v441, 7
    %v443 = vsub.s32 0, %v442
    %v444 = vrot.slane %v416, %v443
    %v445 = vlaneseq
    %v446 = vshrl.u32 %v445, 7
    %v447 = vsub.s32 0, %v446
    %v448 = vrot.slane %v418, %v447
    %v449 = vlaneseq
    %v450 = vshrl.u32 %v449, 7
    %v451 = vsub.s32 0, %v450
    %v452 = vrot.slane %v420, %v451
    %v461 = vadd.f32 %v233, %v424
    %v462 = vadd.f32 %v233, %v428
    %v463 = vadd.f32 %v233, %v432
    %v464 = vadd.f32 %v233, %v436
    %v465 = vadd.f32 %v233, %v440
    %v466 = vadd.f32 %v233, %v444
    %v467 = vadd.f32 %v233, %v448
    %v468 = vadd.f32 %v233, %v452
    %v469 = vadd.f32 %v461, %v333
    %v470 = vadd.f32 %v462, %v338
    %v471 = vadd.f32 %v463, %v343
    %v472 = vadd.f32 %v464, %v348
    %v473 = vadd.f32 %v465, %v353
    %v474 = vadd.f32 %v466, %v358
    %v475 = vadd.f32 %v467, %v363
    %v476 = vadd.f32 %v468, %v368
    %vm477 = vcmp.ge.f32.partialorder %v469, 0.0
    %vm478 = vcmp.ge.f32.partialorder %v470, 0.0
    %vm479 = vcmp.ge.f32.partialorder %v471, 0.0
    %vm480 = vcmp.ge.f32.partialorder %v472, 0.0
    %vm481 = vcmp.ge.f32.partialorder %v473, 0.0
    %vm482 = vcmp.ge.f32.partialorder %v474, 0.0
    %vm483 = vcmp.ge.f32.partialorder %v475, 0.0
    %vm484 = vcmp.ge.f32.partialorder %v476, 0.0
    %v485 = vmul.f32 %v469, 0.1
    %v486 = vmul.f32 %v470, 0.1
    %v487 = vmul.f32 %v471, 0.1
    %v488 = vmul.f32 %v472, 0.1
    %v489 = vmul.f32 %v473, 0.1
    %v490 = vmul.f32 %v474, 0.1
    %v491 = vmul.f32 %v475, 0.1
    %v492 = vmul.f32 %v476, 0.1
    %v493 = vsel %vm477, %v469, %v485
    %v494 = vsel %vm478, %v470, %v486
    %v495 = vsel %vm479, %v471, %v487
    %v496 = vsel %vm480, %v472, %v488
    %v497 = vsel %vm481, %v473, %v489
    %v498 = vsel %vm482, %v474, %v490
    %v499 = vsel %vm483, %v475, %v491
    %v500 = vsel %vm484, %v476, %v492
    %v501 = vlaneseq
    %v502 = vshrl.u32 %v501, 7
    %v503 = vsub.s32 0, %v502
    %v504 = vrot.slane %v149, %v503
    %v505 = vmul.f32 %v493, %v504
    %v506 = vmul.f32 %v494, %v504
    %v507 = vmul.f32 %v495, %v504
    %v508 = vmul.f32 %v496, %v504
    %v509 = vmul.f32 %v497, %v504
    %v510 = vmul.f32 %v498, %v504
    %v511 = vmul.f32 %v499, %v504
    %v512 = vmul.f32 %v500, %v504
    %v513 = vsel %vm162, %v505, 0.0
    %514 = vadd.xlane.f32.xlu0 %v513
    %v515 = vpop.xlane.xlu0 %514
    %v516 = vsel %vm162, %v506, 0.0
    %517 = vadd.xlane.f32.xlu0 %v516
    %v518 = vpop.xlane.xlu0 %517
    %v519 = vsel %vm162, %v507, 0.0
    %520 = vadd.xlane.f32.xlu0 %v519
    %v521 = vpop.xlane.xlu0 %520
    %v522 = vsel %vm162, %v508, 0.0
    %523 = vadd.xlane.f32.xlu0 %v522
    %v524 = vpop.xlane.xlu0 %523
    %v525 = vsel %vm162, %v509, 0.0
    %526 = vadd.xlane.f32.xlu0 %v525
    %v527 = vpop.xlane.xlu0 %526
    %v528 = vsel %vm162, %v510, 0.0
    %529 = vadd.xlane.f32.xlu0 %v528
    %v530 = vpop.xlane.xlu0 %529
    %v531 = vsel %vm162, %v511, 0.0
    %532 = vadd.xlane.f32.xlu0 %v531
    %v533 = vpop.xlane.xlu0 %532
    %v534 = vsel %vm162, %v512, 0.0
    %535 = vadd.xlane.f32.xlu0 %v534
    %v536 = vpop.xlane.xlu0 %535
    %v545 = vlaneseq
    %v546 = vand.u32 %v545, 127
    %v547 = vlaneseq
    %v548 = vshrl.u32 %v547, 7
    %v549 = vsub.s32 %v546, %v548
    %v550 = vrot.slane %v515, %v549
    %v551 = vlaneseq
    %v552 = vshrl.u32 %v551, 7
    %v553 = vsub.s32 %v546, %v552
    %v554 = vrot.slane %v518, %v553
    %v555 = vlaneseq
    %v556 = vshrl.u32 %v555, 7
    %v557 = vsub.s32 %v546, %v556
    %v558 = vrot.slane %v521, %v557
    %v559 = vlaneseq
    %v560 = vshrl.u32 %v559, 7
    %v561 = vsub.s32 %v546, %v560
    %v562 = vrot.slane %v524, %v561
    %v563 = vlaneseq
    %v564 = vshrl.u32 %v563, 7
    %v565 = vsub.s32 %v546, %v564
    %v566 = vrot.slane %v527, %v565
    %v567 = vlaneseq
    %v568 = vshrl.u32 %v567, 7
    %v569 = vsub.s32 %v546, %v568
    %v570 = vrot.slane %v530, %v569
    %v571 = vlaneseq
    %v572 = vshrl.u32 %v571, 7
    %v573 = vsub.s32 %v546, %v572
    %v574 = vrot.slane %v533, %v573
    %v575 = vlaneseq
    %v576 = vshrl.u32 %v575, 7
    %v577 = vsub.s32 %v546, %v576
    %v578 = vrot.slane %v536, %v577
    %vm579 = vcmask 1041409
    %v580 = vsel %vm579, %v554, %v550
    %vm581 = vcmask 1042434
    %v582 = vsel %vm581, %v558, %v580
    %vm583 = vcmask 1043459
    %v584 = vsel %vm583, %v562, %v582
    %vm585 = vcmask 1044484
    %v586 = vsel %vm585, %v566, %v584
    %vm587 = vcmask 1045509
    %v588 = vsel %vm587, %v570, %v586
    %vm589 = vcmask 1046534
    %v590 = vsel %vm589, %v574, %v588
    %vm591 = vcmask 1047559
    %v592 = vsel %vm591, %v578, %v590
    %v594 = vsel %vm44, %v592, -1e+30
    %vm595 = vcmask 64512
    %v596 = vsel %vm595, %v594, -inf
    %597 = vmax.xlane.f32.xlu0 %v596
    %v598 = vpop.xlane.xlu0 %597
    %v599 = vsub.f32 %v594, %v598
    %v600 = vmul.f32 %v599, 1.442695
    %v601 = vpow.pop %v600
    %v602 = vsel %vm595, %v601, 0.0
    %603 = vadd.xlane.f32.xlu0 %v602
    %v604 = vpop.xlane.xlu0 %603
    %v605 = vrcp.pop %v604
    %v606 = vmul.f32 %v601, %v605
    %v607 = vlaneseq
    %v608 = vshrl.u32 %v607, 7
    %v609 = vsub.s32 1, %v608
    %v610 = vrot.slane %v149, %v609
    %612 = vrot.lane.b32.xlu0 %v610, 32
    %v613 = vpop.permute.xlu0 %612
    %v615 = vmul.f32 %v493, %v613
    %v616 = vmul.f32 %v494, %v613
    %v617 = vmul.f32 %v495, %v613
    %v618 = vmul.f32 %v496, %v613
    %v619 = vmul.f32 %v497, %v613
    %v620 = vmul.f32 %v498, %v613
    %v621 = vmul.f32 %v499, %v613
    %v622 = vmul.f32 %v500, %v613
    %631 = vrot.lane.b32.xlu0 %v615, 96
    %v632 = vpop.permute.xlu0 %631
    %633 = vrot.lane.b32.xlu0 %v616, 96
    %v634 = vpop.permute.xlu0 %633
    %635 = vrot.lane.b32.xlu0 %v617, 96
    %v636 = vpop.permute.xlu0 %635
    %637 = vrot.lane.b32.xlu0 %v618, 96
    %v638 = vpop.permute.xlu0 %637
    %639 = vrot.lane.b32.xlu0 %v619, 96
    %v640 = vpop.permute.xlu0 %639
    %641 = vrot.lane.b32.xlu0 %v620, 96
    %v642 = vpop.permute.xlu0 %641
    %643 = vrot.lane.b32.xlu0 %v621, 96
    %v644 = vpop.permute.xlu0 %643
    %645 = vrot.lane.b32.xlu0 %v622, 96
    %v646 = vpop.permute.xlu0 %645
    %v655 = vsel %vm162, %v632, 0.0
    %656 = vadd.xlane.f32.xlu0 %v655
    %v657 = vpop.xlane.xlu0 %656
    %v658 = vsel %vm162, %v634, 0.0
    %659 = vadd.xlane.f32.xlu0 %v658
    %v660 = vpop.xlane.xlu0 %659
    %v661 = vsel %vm162, %v636, 0.0
    %662 = vadd.xlane.f32.xlu0 %v661
    %v663 = vpop.xlane.xlu0 %662
    %v664 = vsel %vm162, %v638, 0.0
    %665 = vadd.xlane.f32.xlu0 %v664
    %v666 = vpop.xlane.xlu0 %665
    %v667 = vsel %vm162, %v640, 0.0
    %668 = vadd.xlane.f32.xlu0 %v667
    %v669 = vpop.xlane.xlu0 %668
    %v670 = vsel %vm162, %v642, 0.0
    %671 = vadd.xlane.f32.xlu0 %v670
    %v672 = vpop.xlane.xlu0 %671
    %v673 = vsel %vm162, %v644, 0.0
    %674 = vadd.xlane.f32.xlu0 %v673
    %v675 = vpop.xlane.xlu0 %674
    %v676 = vsel %vm162, %v646, 0.0
    %677 = vadd.xlane.f32.xlu0 %v676
    %v678 = vpop.xlane.xlu0 %677
    %v687 = vlaneseq
    %v688 = vshrl.u32 %v687, 7
    %v689 = vsub.s32 %v546, %v688
    %v690 = vrot.slane %v657, %v689
    %v691 = vlaneseq
    %v692 = vshrl.u32 %v691, 7
    %v693 = vsub.s32 %v546, %v692
    %v694 = vrot.slane %v660, %v693
    %v695 = vlaneseq
    %v696 = vshrl.u32 %v695, 7
    %v697 = vsub.s32 %v546, %v696
    %v698 = vrot.slane %v663, %v697
    %v699 = vlaneseq
    %v700 = vshrl.u32 %v699, 7
    %v701 = vsub.s32 %v546, %v700
    %v702 = vrot.slane %v666, %v701
    %v703 = vlaneseq
    %v704 = vshrl.u32 %v703, 7
    %v705 = vsub.s32 %v546, %v704
    %v706 = vrot.slane %v669, %v705
    %v707 = vlaneseq
    %v708 = vshrl.u32 %v707, 7
    %v709 = vsub.s32 %v546, %v708
    %v710 = vrot.slane %v672, %v709
    %v711 = vlaneseq
    %v712 = vshrl.u32 %v711, 7
    %v713 = vsub.s32 %v546, %v712
    %v714 = vrot.slane %v675, %v713
    %v715 = vlaneseq
    %v716 = vshrl.u32 %v715, 7
    %v717 = vsub.s32 %v546, %v716
    %v718 = vrot.slane %v678, %v717
    %v719 = vsel %vm579, %v694, %v690
    %v720 = vsel %vm581, %v698, %v719
    %v721 = vsel %vm583, %v702, %v720
    %v722 = vsel %vm585, %v706, %v721
    %v723 = vsel %vm587, %v710, %v722
    %v724 = vsel %vm589, %v714, %v723
    %v725 = vsel %vm591, %v718, %v724
    %v727 = vsel %vm44, %v725, -1e+30
    %v728 = vsel %vm595, %v727, -inf
    %729 = vmax.xlane.f32.xlu0 %v728
    %v730 = vpop.xlane.xlu0 %729
    %v731 = vsub.f32 %v727, %v730
    %v732 = vmul.f32 %v731, 1.442695
    %v733 = vpow.pop %v732
    %v734 = vsel %vm595, %v733, 0.0
    %735 = vadd.xlane.f32.xlu0 %v734
    %v736 = vpop.xlane.xlu0 %735
    %v737 = vrcp.pop %v736
    %v738 = vmul.f32 %v733, %v737
    %740 = vrot.lane.b32.xlu0 %v233, 96
    %v741 = vpop.permute.xlu0 %740
    %v744 = vsel %vm595, %v738, 0
    %746 = vmatprep.subr.mxu0 0.0
    %747 = vmatpush1.msra.mxu0 %v741
    %748 = vmatprep.subr.mxu0 0.0
    %749 = vmatpush1.msra.mxu0 0.0
    %750 = vmatprep.subr.mxu0 0.0
    %751 = vmatpush1.msra.mxu0 0.0
    %752 = vmatprep.subr.mxu0 0.0
    %753 = vmatpush1.msra.mxu0 0.0
    %754 = vmatprep.subr.mxu0 0.0
    %755 = vmatpush1.msra.mxu0 0.0
    %756 = vmatprep.subr.mxu0 0.0
    %757 = vmatpush1.msra.mxu0 0.0
    %758 = vmatprep.subr.mxu0 0.0
    %759 = vmatpush1.msra.mxu0 0.0
    %760 = vmatprep.subr.mxu0 0.0
    %761 = vmatpush1.msra.mxu0 0.0
    %762 = vmatprep.subr.mxu0 0.0
    %763 = vmatpush1.msra.mxu0 0.0
    %764 = vmatprep.subr.mxu0 0.0
    %765 = vmatpush1.msra.mxu0 0.0
    %766 = vmatprep.subr.mxu0 0.0
    %767 = vmatpush1.msra.mxu0 0.0
    %768 = vmatprep.subr.mxu0 0.0
    %769 = vmatpush1.msra.mxu0 0.0
    %770 = vmatprep.subr.mxu0 0.0
    %771 = vmatpush1.msra.mxu0 0.0
    %772 = vmatprep.subr.mxu0 0.0
    %773 = vmatpush1.msra.mxu0 0.0
    %774 = vmatprep.subr.mxu0 0.0
    %775 = vmatpush1.msra.mxu0 0.0
    %776 = vmatprep.subr.mxu0 0.0
    %777 = vmatpush1.msra.mxu0 0.0
    %778 = vmatprep.subr.mxu0 0.0
    %779 = vmatpush1.msra.mxu0 0.0
    %780 = vmatprep.subr.mxu0 0.0
    %781 = vmatpush1.msra.mxu0 0.0
    %782 = vmatprep.subr.mxu0 0.0
    %783 = vmatpush1.msra.mxu0 0.0
    %784 = vmatprep.subr.mxu0 0.0
    %785 = vmatpush1.msra.mxu0 0.0
    %786 = vmatprep.subr.mxu0 0.0
    %787 = vmatpush1.msra.mxu0 0.0
    %788 = vmatprep.subr.mxu0 0.0
    %789 = vmatpush1.msra.mxu0 0.0
    %790 = vmatprep.subr.mxu0 0.0
    %791 = vmatpush1.msra.mxu0 0.0
    %792 = vmatprep.subr.mxu0 0.0
    %793 = vmatpush1.msra.mxu0 0.0
    %794 = vmatprep.subr.mxu0 0.0
    %795 = vmatpush1.msra.mxu0 0.0
    %796 = vmatprep.subr.mxu0 0.0
    %797 = vmatpush1.msra.mxu0 0.0
    %798 = vmatprep.subr.mxu0 0.0
    %799 = vmatpush1.msra.mxu0 0.0
    %800 = vmatprep.subr.mxu0 0.0
    %801 = vmatpush1.msra.mxu0 0.0
    %802 = vmatprep.subr.mxu0 0.0
    %803 = vmatpush1.msra.mxu0 0.0
    %804 = vmatprep.subr.mxu0 0.0
    %805 = vmatpush1.msra.mxu0 0.0
    %806 = vmatprep.subr.mxu0 0.0
    %807 = vmatpush1.msra.mxu0 0.0
    %808 = vmatprep.subr.mxu0 0.0
    %809 = vmatpush1.msra.mxu0 0.0
    %810 = vmatprep.mubr.f32.mxu0 0.0
    %811 = vmatmul.mubr.f32.gmra.mrb[0].mxu0 %v744
    %v812 = vpop.f32.mrb[0].mxu0
    %v813 = vadd.f32 0.0, %v812
    %v814 = vpop.f32.mrb[0].mxu0
    %815 = vdwg.mxu0
    %v817 = vsel %vm595, %v606, 0
    %819 = vmatprep.subr.mxu0 0.0
    %820 = vmatpush1.msra.mxu0 %v233
    %821 = vmatprep.subr.mxu0 0.0
    %822 = vmatpush1.msra.mxu0 0.0
    %823 = vmatprep.subr.mxu0 0.0
    %824 = vmatpush1.msra.mxu0 0.0
    %825 = vmatprep.subr.mxu0 0.0
    %826 = vmatpush1.msra.mxu0 0.0
    %827 = vmatprep.subr.mxu0 0.0
    %828 = vmatpush1.msra.mxu0 0.0
    %829 = vmatprep.subr.mxu0 0.0
    %830 = vmatpush1.msra.mxu0 0.0
    %831 = vmatprep.subr.mxu0 0.0
    %832 = vmatpush1.msra.mxu0 0.0
    %833 = vmatprep.subr.mxu0 0.0
    %834 = vmatpush1.msra.mxu0 0.0
    %835 = vmatprep.subr.mxu0 0.0
    %836 = vmatpush1.msra.mxu0 0.0
    %837 = vmatprep.subr.mxu0 0.0
    %838 = vmatpush1.msra.mxu0 0.0
    %839 = vmatprep.subr.mxu0 0.0
    %840 = vmatpush1.msra.mxu0 0.0
    %841 = vmatprep.subr.mxu0 0.0
    %842 = vmatpush1.msra.mxu0 0.0
    %843 = vmatprep.subr.mxu0 0.0
    %844 = vmatpush1.msra.mxu0 0.0
    %845 = vmatprep.subr.mxu0 0.0
    %846 = vmatpush1.msra.mxu0 0.0
    %847 = vmatprep.subr.mxu0 0.0
    %848 = vmatpush1.msra.mxu0 0.0
    %849 = vmatprep.subr.mxu0 0.0
    %850 = vmatpush1.msra.mxu0 0.0
    %851 = vmatprep.subr.mxu0 0.0
    %852 = vmatpush1.msra.mxu0 0.0
    %853 = vmatprep.subr.mxu0 0.0
    %854 = vmatpush1.msra.mxu0 0.0
    %855 = vmatprep.subr.mxu0 0.0
    %856 = vmatpush1.msra.mxu0 0.0
    %857 = vmatprep.subr.mxu0 0.0
    %858 = vmatpush1.msra.mxu0 0.0
    %859 = vmatprep.subr.mxu0 0.0
    %860 = vmatpush1.msra.mxu0 0.0
    %861 = vmatprep.subr.mxu0 0.0
    %862 = vmatpush1.msra.mxu0 0.0
    %863 = vmatprep.subr.mxu0 0.0
    %864 = vmatpush1.msra.mxu0 0.0
    %865 = vmatprep.subr.mxu0 0.0
    %866 = vmatpush1.msra.mxu0 0.0
    %867 = vmatprep.subr.mxu0 0.0
    %868 = vmatpush1.msra.mxu0 0.0
    %869 = vmatprep.subr.mxu0 0.0
    %870 = vmatpush1.msra.mxu0 0.0
    %871 = vmatprep.subr.mxu0 0.0
    %872 = vmatpush1.msra.mxu0 0.0
    %873 = vmatprep.subr.mxu0 0.0
    %874 = vmatpush1.msra.mxu0 0.0
    %875 = vmatprep.subr.mxu0 0.0
    %876 = vmatpush1.msra.mxu0 0.0
    %877 = vmatprep.subr.mxu0 0.0
    %878 = vmatpush1.msra.mxu0 0.0
    %879 = vmatprep.subr.mxu0 0.0
    %880 = vmatpush1.msra.mxu0 0.0
    %881 = vmatprep.subr.mxu0 0.0
    %882 = vmatpush1.msra.mxu0 0.0
    %883 = vmatprep.mubr.f32.mxu0 0.0
    %884 = vmatmul.mubr.f32.gmra.mrb[0].mxu0 %v817
    %v885 = vpop.f32.mrb[0].mxu0
    %v886 = vadd.f32 %v813, %v885
    %v887 = vpop.f32.mrb[0].mxu0
    %888 = vdwg.mxu0
    %v889 = vlaneseq
    %v890 = vshrl.u32 %v889, 7
    %v891 = vsub.s32 2, %v890
    %v892 = vrot.slane %v149, %v891
    %894 = vrot.lane.b32.xlu0 %v892, 64
    %v895 = vpop.permute.xlu0 %894
    %v897 = vmul.f32 %v493, %v895
    %v898 = vmul.f32 %v494, %v895
    %v899 = vmul.f32 %v495, %v895
    %v900 = vmul.f32 %v496, %v895
    %v901 = vmul.f32 %v497, %v895
    %v902 = vmul.f32 %v498, %v895
    %v903 = vmul.f32 %v499, %v895
    %v904 = vmul.f32 %v500, %v895
    %913 = vrot.lane.b32.xlu0 %v897, 64
    %v914 = vpop.permute.xlu0 %913
    %915 = vrot.lane.b32.xlu0 %v898, 64
    %v916 = vpop.permute.xlu0 %915
    %917 = vrot.lane.b32.xlu0 %v899, 64
    %v918 = vpop.permute.xlu0 %917
    %919 = vrot.lane.b32.xlu0 %v900, 64
    %v920 = vpop.permute.xlu0 %919
    %921 = vrot.lane.b32.xlu0 %v901, 64
    %v922 = vpop.permute.xlu0 %921
    %923 = vrot.lane.b32.xlu0 %v902, 64
    %v924 = vpop.permute.xlu0 %923
    %925 = vrot.lane.b32.xlu0 %v903, 64
    %v926 = vpop.permute.xlu0 %925
    %927 = vrot.lane.b32.xlu0 %v904, 64
    %v928 = vpop.permute.xlu0 %927
    %v937 = vsel %vm162, %v914, 0.0
    %938 = vadd.xlane.f32.xlu0 %v937
    %v939 = vpop.xlane.xlu0 %938
    %v940 = vsel %vm162, %v916, 0.0
    %941 = vadd.xlane.f32.xlu0 %v940
    %v942 = vpop.xlane.xlu0 %941
    %v943 = vsel %vm162, %v918, 0.0
    %944 = vadd.xlane.f32.xlu0 %v943
    %v945 = vpop.xlane.xlu0 %944
    %v946 = vsel %vm162, %v920, 0.0
    %947 = vadd.xlane.f32.xlu0 %v946
    %v948 = vpop.xlane.xlu0 %947
    %v949 = vsel %vm162, %v922, 0.0
    %950 = vadd.xlane.f32.xlu0 %v949
    %v951 = vpop.xlane.xlu0 %950
    %v952 = vsel %vm162, %v924, 0.0
    %953 = vadd.xlane.f32.xlu0 %v952
    %v954 = vpop.xlane.xlu0 %953
    %v955 = vsel %vm162, %v926, 0.0
    %956 = vadd.xlane.f32.xlu0 %v955
    %v957 = vpop.xlane.xlu0 %956
    %v958 = vsel %vm162, %v928, 0.0
    %959 = vadd.xlane.f32.xlu0 %v958
    %v960 = vpop.xlane.xlu0 %959
    %v969 = vlaneseq
    %v970 = vshrl.u32 %v969, 7
    %v971 = vsub.s32 %v546, %v970
    %v972 = vrot.slane %v939, %v971
    %v973 = vlaneseq
    %v974 = vshrl.u32 %v973, 7
    %v975 = vsub.s32 %v546, %v974
    %v976 = vrot.slane %v942, %v975
    %v977 = vlaneseq
    %v978 = vshrl.u32 %v977, 7
    %v979 = vsub.s32 %v546, %v978
    %v980 = vrot.slane %v945, %v979
    %v981 = vlaneseq
    %v982 = vshrl.u32 %v981, 7
    %v983 = vsub.s32 %v546, %v982
    %v984 = vrot.slane %v948, %v983
    %v985 = vlaneseq
    %v986 = vshrl.u32 %v985, 7
    %v987 = vsub.s32 %v546, %v986
    %v988 = vrot.slane %v951, %v987
    %v989 = vlaneseq
    %v990 = vshrl.u32 %v989, 7
    %v991 = vsub.s32 %v546, %v990
    %v992 = vrot.slane %v954, %v991
    %v993 = vlaneseq
    %v994 = vshrl.u32 %v993, 7
    %v995 = vsub.s32 %v546, %v994
    %v996 = vrot.slane %v957, %v995
    %v997 = vlaneseq
    %v998 = vshrl.u32 %v997, 7
    %v999 = vsub.s32 %v546, %v998
    %v1000 = vrot.slane %v960, %v999
    %v1001 = vsel %vm579, %v976, %v972
    %v1002 = vsel %vm581, %v980, %v1001
    %v1003 = vsel %vm583, %v984, %v1002
    %v1004 = vsel %vm585, %v988, %v1003
    %v1005 = vsel %vm587, %v992, %v1004
    %v1006 = vsel %vm589, %v996, %v1005
    %v1007 = vsel %vm591, %v1000, %v1006
    %v1009 = vsel %vm44, %v1007, -1e+30
    %v1010 = vsel %vm595, %v1009, -inf
    %1011 = vmax.xlane.f32.xlu0 %v1010
    %v1012 = vpop.xlane.xlu0 %1011
    %v1013 = vsub.f32 %v1009, %v1012
    %v1014 = vmul.f32 %v1013, 1.442695
    %v1015 = vpow.pop %v1014
    %v1016 = vsel %vm595, %v1015, 0.0
    %1017 = vadd.xlane.f32.xlu0 %v1016
    %v1018 = vpop.xlane.xlu0 %1017
    %v1019 = vrcp.pop %v1018
    %v1020 = vmul.f32 %v1015, %v1019
    %1021 = vrot.lane.b32.xlu0 %v233, 64
    %v1022 = vpop.permute.xlu0 %1021
    %v1025 = vsel %vm595, %v1020, 0
    %1027 = vmatprep.subr.mxu0 0.0
    %1028 = vmatpush1.msra.mxu0 %v1022
    %1029 = vmatprep.subr.mxu0 0.0
    %1030 = vmatpush1.msra.mxu0 0.0
    %1031 = vmatprep.subr.mxu0 0.0
    %1032 = vmatpush1.msra.mxu0 0.0
    %1033 = vmatprep.subr.mxu0 0.0
    %1034 = vmatpush1.msra.mxu0 0.0
    %1035 = vmatprep.subr.mxu0 0.0
    %1036 = vmatpush1.msra.mxu0 0.0
    %1037 = vmatprep.subr.mxu0 0.0
    %1038 = vmatpush1.msra.mxu0 0.0
    %1039 = vmatprep.subr.mxu0 0.0
    %1040 = vmatpush1.msra.mxu0 0.0
    %1041 = vmatprep.subr.mxu0 0.0
    %1042 = vmatpush1.msra.mxu0 0.0
    %1043 = vmatprep.subr.mxu0 0.0
    %1044 = vmatpush1.msra.mxu0 0.0
    %1045 = vmatprep.subr.mxu0 0.0
    %1046 = vmatpush1.msra.mxu0 0.0
    %1047 = vmatprep.subr.mxu0 0.0
    %1048 = vmatpush1.msra.mxu0 0.0
    %1049 = vmatprep.subr.mxu0 0.0
    %1050 = vmatpush1.msra.mxu0 0.0
    %1051 = vmatprep.subr.mxu0 0.0
    %1052 = vmatpush1.msra.mxu0 0.0
    %1053 = vmatprep.subr.mxu0 0.0
    %1054 = vmatpush1.msra.mxu0 0.0
    %1055 = vmatprep.subr.mxu0 0.0
    %1056 = vmatpush1.msra.mxu0 0.0
    %1057 = vmatprep.subr.mxu0 0.0
    %1058 = vmatpush1.msra.mxu0 0.0
    %1059 = vmatprep.subr.mxu0 0.0
    %1060 = vmatpush1.msra.mxu0 0.0
    %1061 = vmatprep.subr.mxu0 0.0
    %1062 = vmatpush1.msra.mxu0 0.0
    %1063 = vmatprep.subr.mxu0 0.0
    %1064 = vmatpush1.msra.mxu0 0.0
    %1065 = vmatprep.subr.mxu0 0.0
    %1066 = vmatpush1.msra.mxu0 0.0
    %1067 = vmatprep.subr.mxu0 0.0
    %1068 = vmatpush1.msra.mxu0 0.0
    %1069 = vmatprep.subr.mxu0 0.0
    %1070 = vmatpush1.msra.mxu0 0.0
    %1071 = vmatprep.subr.mxu0 0.0
    %1072 = vmatpush1.msra.mxu0 0.0
    %1073 = vmatprep.subr.mxu0 0.0
    %1074 = vmatpush1.msra.mxu0 0.0
    %1075 = vmatprep.subr.mxu0 0.0
    %1076 = vmatpush1.msra.mxu0 0.0
    %1077 = vmatprep.subr.mxu0 0.0
    %1078 = vmatpush1.msra.mxu0 0.0
    %1079 = vmatprep.subr.mxu0 0.0
    %1080 = vmatpush1.msra.mxu0 0.0
    %1081 = vmatprep.subr.mxu0 0.0
    %1082 = vmatpush1.msra.mxu0 0.0
    %1083 = vmatprep.subr.mxu0 0.0
    %1084 = vmatpush1.msra.mxu0 0.0
    %1085 = vmatprep.subr.mxu0 0.0
    %1086 = vmatpush1.msra.mxu0 0.0
    %1087 = vmatprep.subr.mxu0 0.0
    %1088 = vmatpush1.msra.mxu0 0.0
    %1089 = vmatprep.subr.mxu0 0.0
    %1090 = vmatpush1.msra.mxu0 0.0
    %1091 = vmatprep.mubr.f32.mxu0 0.0
    %1092 = vmatmul.mubr.f32.gmra.mrb[0].mxu0 %v1025
    %v1093 = vpop.f32.mrb[0].mxu0
    %v1094 = vadd.f32 0.0, %v1093
    %v1095 = vpop.f32.mrb[0].mxu0
    %1096 = vdwg.mxu0
    %v1097 = vadd.f32 %v886, %v1094
    %v1098 = vlaneseq
    %v1099 = vshrl.u32 %v1098, 7
    %v1100 = vsub.s32 3, %v1099
    %v1101 = vrot.slane %v149, %v1100
    %1103 = vrot.lane.b32.xlu0 %v1101, 96
    %v1104 = vpop.permute.xlu0 %1103
    %v1106 = vmul.f32 %v493, %v1104
    %v1107 = vmul.f32 %v494, %v1104
    %v1108 = vmul.f32 %v495, %v1104
    %v1109 = vmul.f32 %v496, %v1104
    %v1110 = vmul.f32 %v497, %v1104
    %v1111 = vmul.f32 %v498, %v1104
    %v1112 = vmul.f32 %v499, %v1104
    %v1113 = vmul.f32 %v500, %v1104
    %1122 = vrot.lane.b32.xlu0 %v1106, 32
    %v1123 = vpop.permute.xlu0 %1122
    %1124 = vrot.lane.b32.xlu0 %v1107, 32
    %v1125 = vpop.permute.xlu0 %1124
    %1126 = vrot.lane.b32.xlu0 %v1108, 32
    %v1127 = vpop.permute.xlu0 %1126
    %1128 = vrot.lane.b32.xlu0 %v1109, 32
    %v1129 = vpop.permute.xlu0 %1128
    %1130 = vrot.lane.b32.xlu0 %v1110, 32
    %v1131 = vpop.permute.xlu0 %1130
    %1132 = vrot.lane.b32.xlu0 %v1111, 32
    %v1133 = vpop.permute.xlu0 %1132
    %1134 = vrot.lane.b32.xlu0 %v1112, 32
    %v1135 = vpop.permute.xlu0 %1134
    %1136 = vrot.lane.b32.xlu0 %v1113, 32
    %v1137 = vpop.permute.xlu0 %1136
    %v1146 = vsel %vm162, %v1123, 0.0
    %1147 = vadd.xlane.f32.xlu0 %v1146
    %v1148 = vpop.xlane.xlu0 %1147
    %v1149 = vsel %vm162, %v1125, 0.0
    %1150 = vadd.xlane.f32.xlu0 %v1149
    %v1151 = vpop.xlane.xlu0 %1150
    %v1152 = vsel %vm162, %v1127, 0.0
    %1153 = vadd.xlane.f32.xlu0 %v1152
    %v1154 = vpop.xlane.xlu0 %1153
    %v1155 = vsel %vm162, %v1129, 0.0
    %1156 = vadd.xlane.f32.xlu0 %v1155
    %v1157 = vpop.xlane.xlu0 %1156
    %v1158 = vsel %vm162, %v1131, 0.0
    %1159 = vadd.xlane.f32.xlu0 %v1158
    %v1160 = vpop.xlane.xlu0 %1159
    %v1161 = vsel %vm162, %v1133, 0.0
    %1162 = vadd.xlane.f32.xlu0 %v1161
    %v1163 = vpop.xlane.xlu0 %1162
    %v1164 = vsel %vm162, %v1135, 0.0
    %1165 = vadd.xlane.f32.xlu0 %v1164
    %v1166 = vpop.xlane.xlu0 %1165
    %v1167 = vsel %vm162, %v1137, 0.0
    %1168 = vadd.xlane.f32.xlu0 %v1167
    %v1169 = vpop.xlane.xlu0 %1168
    %v1178 = vlaneseq
    %v1179 = vshrl.u32 %v1178, 7
    %v1180 = vsub.s32 %v546, %v1179
    %v1181 = vrot.slane %v1148, %v1180
    %v1182 = vlaneseq
    %v1183 = vshrl.u32 %v1182, 7
    %v1184 = vsub.s32 %v546, %v1183
    %v1185 = vrot.slane %v1151, %v1184
    %v1186 = vlaneseq
    %v1187 = vshrl.u32 %v1186, 7
    %v1188 = vsub.s32 %v546, %v1187
    %v1189 = vrot.slane %v1154, %v1188
    %v1190 = vlaneseq
    %v1191 = vshrl.u32 %v1190, 7
    %v1192 = vsub.s32 %v546, %v1191
    %v1193 = vrot.slane %v1157, %v1192
    %v1194 = vlaneseq
    %v1195 = vshrl.u32 %v1194, 7
    %v1196 = vsub.s32 %v546, %v1195
    %v1197 = vrot.slane %v1160, %v1196
    %v1198 = vlaneseq
    %v1199 = vshrl.u32 %v1198, 7
    %v1200 = vsub.s32 %v546, %v1199
    %v1201 = vrot.slane %v1163, %v1200
    %v1202 = vlaneseq
    %v1203 = vshrl.u32 %v1202, 7
    %v1204 = vsub.s32 %v546, %v1203
    %v1205 = vrot.slane %v1166, %v1204
    %v1206 = vlaneseq
    %v1207 = vshrl.u32 %v1206, 7
    %v1208 = vsub.s32 %v546, %v1207
    %v1209 = vrot.slane %v1169, %v1208
    %v1210 = vsel %vm579, %v1185, %v1181
    %v1211 = vsel %vm581, %v1189, %v1210
    %v1212 = vsel %vm583, %v1193, %v1211
    %v1213 = vsel %vm585, %v1197, %v1212
    %v1214 = vsel %vm587, %v1201, %v1213
    %v1215 = vsel %vm589, %v1205, %v1214
    %v1216 = vsel %vm591, %v1209, %v1215
    %v1218 = vsel %vm44, %v1216, -1e+30
    %v1219 = vsel %vm595, %v1218, -inf
    %1220 = vmax.xlane.f32.xlu0 %v1219
    %v1221 = vpop.xlane.xlu0 %1220
    %v1222 = vsub.f32 %v1218, %v1221
    %v1223 = vmul.f32 %v1222, 1.442695
    %v1224 = vpow.pop %v1223
    %v1225 = vsel %vm595, %v1224, 0.0
    %1226 = vadd.xlane.f32.xlu0 %v1225
    %v1227 = vpop.xlane.xlu0 %1226
    %v1228 = vrcp.pop %v1227
    %v1229 = vmul.f32 %v1224, %v1228
    %1230 = vrot.lane.b32.xlu0 %v233, 32
    %v1231 = vpop.permute.xlu0 %1230
    %v1234 = vsel %vm595, %v1229, 0
    %1236 = vmatprep.subr.mxu0 0.0
    %1237 = vmatpush1.msra.mxu0 %v1231
    %1238 = vmatprep.subr.mxu0 0.0
    %1239 = vmatpush1.msra.mxu0 0.0
    %1240 = vmatprep.subr.mxu0 0.0
    %1241 = vmatpush1.msra.mxu0 0.0
    %1242 = vmatprep.subr.mxu0 0.0
    %1243 = vmatpush1.msra.mxu0 0.0
    %1244 = vmatprep.subr.mxu0 0.0
    %1245 = vmatpush1.msra.mxu0 0.0
    %1246 = vmatprep.subr.mxu0 0.0
    %1247 = vmatpush1.msra.mxu0 0.0
    %1248 = vmatprep.subr.mxu0 0.0
    %1249 = vmatpush1.msra.mxu0 0.0
    %1250 = vmatprep.subr.mxu0 0.0
    %1251 = vmatpush1.msra.mxu0 0.0
    %1252 = vmatprep.subr.mxu0 0.0
    %1253 = vmatpush1.msra.mxu0 0.0
    %1254 = vmatprep.subr.mxu0 0.0
    %1255 = vmatpush1.msra.mxu0 0.0
    %1256 = vmatprep.subr.mxu0 0.0
    %1257 = vmatpush1.msra.mxu0 0.0
    %1258 = vmatprep.subr.mxu0 0.0
    %1259 = vmatpush1.msra.mxu0 0.0
    %1260 = vmatprep.subr.mxu0 0.0
    %1261 = vmatpush1.msra.mxu0 0.0
    %1262 = vmatprep.subr.mxu0 0.0
    %1263 = vmatpush1.msra.mxu0 0.0
    %1264 = vmatprep.subr.mxu0 0.0
    %1265 = vmatpush1.msra.mxu0 0.0
    %1266 = vmatprep.subr.mxu0 0.0
    %1267 = vmatpush1.msra.mxu0 0.0
    %1268 = vmatprep.subr.mxu0 0.0
    %1269 = vmatpush1.msra.mxu0 0.0
    %1270 = vmatprep.subr.mxu0 0.0
    %1271 = vmatpush1.msra.mxu0 0.0
    %1272 = vmatprep.subr.mxu0 0.0
    %1273 = vmatpush1.msra.mxu0 0.0
    %1274 = vmatprep.subr.mxu0 0.0
    %1275 = vmatpush1.msra.mxu0 0.0
    %1276 = vmatprep.subr.mxu0 0.0
    %1277 = vmatpush1.msra.mxu0 0.0
    %1278 = vmatprep.subr.mxu0 0.0
    %1279 = vmatpush1.msra.mxu0 0.0
    %1280 = vmatprep.subr.mxu0 0.0
    %1281 = vmatpush1.msra.mxu0 0.0
    %1282 = vmatprep.subr.mxu0 0.0
    %1283 = vmatpush1.msra.mxu0 0.0
    %1284 = vmatprep.subr.mxu0 0.0
    %1285 = vmatpush1.msra.mxu0 0.0
    %1286 = vmatprep.subr.mxu0 0.0
    %1287 = vmatpush1.msra.mxu0 0.0
    %1288 = vmatprep.subr.mxu0 0.0
    %1289 = vmatpush1.msra.mxu0 0.0
    %1290 = vmatprep.subr.mxu0 0.0
    %1291 = vmatpush1.msra.mxu0 0.0
    %1292 = vmatprep.subr.mxu0 0.0
    %1293 = vmatpush1.msra.mxu0 0.0
    %1294 = vmatprep.subr.mxu0 0.0
    %1295 = vmatpush1.msra.mxu0 0.0
    %1296 = vmatprep.subr.mxu0 0.0
    %1297 = vmatpush1.msra.mxu0 0.0
    %1298 = vmatprep.subr.mxu0 0.0
    %1299 = vmatpush1.msra.mxu0 0.0
    %1300 = vmatprep.mubr.f32.mxu0 0.0
    %1301 = vmatmul.mubr.f32.gmra.mrb[0].mxu0 %v1234
    %v1302 = vpop.f32.mrb[0].mxu0
    %v1303 = vadd.f32 0.0, %v1302
    %v1304 = vpop.f32.mrb[0].mxu0
    %1305 = vdwg.mxu0
    %v1306 = vadd.f32 %v1097, %v1303
    %v1307 = vmul.f32 %v1306, 0.25
    %v1309 = vlaneseq
    %v1310 = vshrl.u32 %v1309, 7
    %v1311 = vsub.s32 0, %v1310
    %v1312 = vrot.slane %v150, %v1311
    %v1314 = vadd.f32 %v1307, %v1312
    %s1315 = scalar_lea.vmem %s5, 64
    %v1316 = vld [vmem:[%s1315] sm:$0xff]
    %v1317 = vld [vmem:[%s1315 + $0x8] sm:$0xff]
    %v1318 = vld [vmem:[%s1315 + $0x10] sm:$0xff]
    %v1319 = vld [vmem:[%s1315 + $0x18] sm:$0xff]
    %v1320 = vld [vmem:[%s1315 + $0x20] sm:$0xff]
    %v1321 = vld [vmem:[%s1315 + $0x28] sm:$0xff]
    %v1322 = vld [vmem:[%s1315 + $0x30] sm:$0xff]
    %v1323 = vld [vmem:[%s1315 + $0x38] sm:$0xff]
    %s1324 = scalar_lea.vmem %s6, 2
    %v1325 = vld [vmem:[%s1324] sm:$0x3]
    %s1326 = scalar_lea.vmem %s7, 4
    %v1327 = vld [vmem:[%s1326] sm:$0xf]
    %s1328 = scalar_lea.vmem %s8, 4
    %v1329 = vld [vmem:[%s1328] sm:$0xf]
    %s1330 = scalar_lea.vmem %s9, 1
    %v1331 = vld [vmem:[%s1330] sm:$0x1]
    %v1333 = vlaneseq
    %v1334 = vshrl.u32 %v1333, 7
    %v1335 = vsub.s32 0, %v1334
    %v1336 = vrot.slane %v1325, %v1335
    %v1337 = vlaneseq
    %v1338 = vshrl.u32 %v1337, 7
    %v1339 = vsub.s32 1, %v1338
    %v1340 = vrot.slane %v1325, %v1339
    %v1344 = vsel %vm162, %v1314, 0
    %1346 = vmatprep.subr.mxu0 %v1317
    %1347 = vmatpush1.msra.mxu0 %v1316
    %1348 = vmatprep.subr.mxu0 %v1319
    %1349 = vmatpush1.msra.mxu0 %v1318
    %1350 = vmatprep.subr.mxu0 %v1321
    %1351 = vmatpush1.msra.mxu0 %v1320
    %1352 = vmatprep.subr.mxu0 %v1323
    %1353 = vmatpush1.msra.mxu0 %v1322
    %1354 = vmatprep.subr.mxu0 0.0
    %1355 = vmatpush1.msra.mxu0 0.0
    %1356 = vmatprep.subr.mxu0 0.0
    %1357 = vmatpush1.msra.mxu0 0.0
    %1358 = vmatprep.subr.mxu0 0.0
    %1359 = vmatpush1.msra.mxu0 0.0
    %1360 = vmatprep.subr.mxu0 0.0
    %1361 = vmatpush1.msra.mxu0 0.0
    %1362 = vmatprep.subr.mxu0 0.0
    %1363 = vmatpush1.msra.mxu0 0.0
    %1364 = vmatprep.subr.mxu0 0.0
    %1365 = vmatpush1.msra.mxu0 0.0
    %1366 = vmatprep.subr.mxu0 0.0
    %1367 = vmatpush1.msra.mxu0 0.0
    %1368 = vmatprep.subr.mxu0 0.0
    %1369 = vmatpush1.msra.mxu0 0.0
    %1370 = vmatprep.subr.mxu0 0.0
    %1371 = vmatpush1.msra.mxu0 0.0
    %1372 = vmatprep.subr.mxu0 0.0
    %1373 = vmatpush1.msra.mxu0 0.0
    %1374 = vmatprep.subr.mxu0 0.0
    %1375 = vmatpush1.msra.mxu0 0.0
    %1376 = vmatprep.subr.mxu0 0.0
    %1377 = vmatpush1.msra.mxu0 0.0
    %1378 = vmatprep.subr.mxu0 0.0
    %1379 = vmatpush1.msra.mxu0 0.0
    %1380 = vmatprep.subr.mxu0 0.0
    %1381 = vmatpush1.msra.mxu0 0.0
    %1382 = vmatprep.subr.mxu0 0.0
    %1383 = vmatpush1.msra.mxu0 0.0
    %1384 = vmatprep.subr.mxu0 0.0
    %1385 = vmatpush1.msra.mxu0 0.0
    %1386 = vmatprep.subr.mxu0 0.0
    %1387 = vmatpush1.msra.mxu0 0.0
    %1388 = vmatprep.subr.mxu0 0.0
    %1389 = vmatpush1.msra.mxu0 0.0
    %1390 = vmatprep.subr.mxu0 0.0
    %1391 = vmatpush1.msra.mxu0 0.0
    %1392 = vmatprep.subr.mxu0 0.0
    %1393 = vmatpush1.msra.mxu0 0.0
    %1394 = vmatprep.subr.mxu0 0.0
    %1395 = vmatpush1.msra.mxu0 0.0
    %1396 = vmatprep.subr.mxu0 0.0
    %1397 = vmatpush1.msra.mxu0 0.0
    %1398 = vmatprep.subr.mxu0 0.0
    %1399 = vmatpush1.msra.mxu0 0.0
    %1400 = vmatprep.subr.mxu0 0.0
    %1401 = vmatpush1.msra.mxu0 0.0
    %1402 = vmatprep.subr.mxu0 0.0
    %1403 = vmatpush1.msra.mxu0 0.0
    %1404 = vmatprep.subr.mxu0 0.0
    %1405 = vmatpush1.msra.mxu0 0.0
    %1406 = vmatprep.subr.mxu0 0.0
    %1407 = vmatpush1.msra.mxu0 0.0
    %1408 = vmatprep.subr.mxu0 0.0
    %1409 = vmatpush1.msra.mxu0 0.0
    %1410 = vmatprep.mubr.f32.mxu0 0.0
    %1411 = vmatmul.mubr.f32.gmra.mrb[0].mxu0 %v1344
    %v1412 = vpop.f32.mrb[0].mxu0
    %v1413 = vadd.f32 %v1336, %v1412
    %v1414 = vpop.f32.mrb[0].mxu0
    %v1415 = vadd.f32 %v1340, %v1414
    %1416 = vdwg.mxu0
    %v1418 = vsel %vm262, %v1327, 0
    %1420 = vmatprep.subr.mxu0 0.0
    %1421 = vmatpush1.msra.mxu0 %v1418
    %1422 = vmatprep.subr.mxu0 0.0
    %1423 = vmatpush1.msra.mxu0 0.0
    %1424 = vmatprep.subr.mxu0 0.0
    %1425 = vmatpush1.msra.mxu0 0.0
    %1426 = vmatprep.subr.mxu0 0.0
    %1427 = vmatpush1.msra.mxu0 0.0
    %1428 = vmatprep.subr.mxu0 0.0
    %1429 = vmatpush1.msra.mxu0 0.0
    %1430 = vmatprep.subr.mxu0 0.0
    %1431 = vmatpush1.msra.mxu0 0.0
    %1432 = vmatprep.subr.mxu0 0.0
    %1433 = vmatpush1.msra.mxu0 0.0
    %1434 = vmatprep.subr.mxu0 0.0
    %1435 = vmatpush1.msra.mxu0 0.0
    %1436 = vmatprep.subr.mxu0 0.0
    %1437 = vmatpush1.msra.mxu0 0.0
    %1438 = vmatprep.subr.mxu0 0.0
    %1439 = vmatpush1.msra.mxu0 0.0
    %1440 = vmatprep.subr.mxu0 0.0
    %1441 = vmatpush1.msra.mxu0 0.0
    %1442 = vmatprep.subr.mxu0 0.0
    %1443 = vmatpush1.msra.mxu0 0.0
    %1444 = vmatprep.subr.mxu0 0.0
    %1445 = vmatpush1.msra.mxu0 0.0
    %1446 = vmatprep.subr.mxu0 0.0
    %1447 = vmatpush1.msra.mxu0 0.0
    %1448 = vmatprep.subr.mxu0 0.0
    %1449 = vmatpush1.msra.mxu0 0.0
    %1450 = vmatprep.subr.mxu0 0.0
    %1451 = vmatpush1.msra.mxu0 0.0
    %1452 = vmatprep.subr.mxu0 0.0
    %1453 = vmatpush1.msra.mxu0 0.0
    %1454 = vmatprep.subr.mxu0 0.0
    %1455 = vmatpush1.msra.mxu0 0.0
    %1456 = vmatprep.subr.mxu0 0.0
    %1457 = vmatpush1.msra.mxu0 0.0
    %1458 = vmatprep.subr.mxu0 0.0
    %1459 = vmatpush1.msra.mxu0 0.0
    %1460 = vmatprep.subr.mxu0 0.0
    %1461 = vmatpush1.msra.mxu0 0.0
    %1462 = vmatprep.subr.mxu0 0.0
    %1463 = vmatpush1.msra.mxu0 0.0
    %1464 = vmatprep.subr.mxu0 0.0
    %1465 = vmatpush1.msra.mxu0 0.0
    %1466 = vmatprep.subr.mxu0 0.0
    %1467 = vmatpush1.msra.mxu0 0.0
    %1468 = vmatprep.subr.mxu0 0.0
    %1469 = vmatpush1.msra.mxu0 0.0
    %1470 = vmatprep.subr.mxu0 0.0
    %1471 = vmatpush1.msra.mxu0 0.0
    %1472 = vmatprep.subr.mxu0 0.0
    %1473 = vmatpush1.msra.mxu0 0.0
    %1474 = vmatprep.subr.mxu0 0.0
    %1475 = vmatpush1.msra.mxu0 0.0
    %1476 = vmatprep.subr.mxu0 0.0
    %1477 = vmatpush1.msra.mxu0 0.0
    %1478 = vmatprep.subr.mxu0 0.0
    %1479 = vmatpush1.msra.mxu0 0.0
    %1480 = vmatprep.subr.mxu0 0.0
    %1481 = vmatpush1.msra.mxu0 0.0
    %1482 = vmatprep.subr.mxu0 0.0
    %1483 = vmatpush1.msra.mxu0 0.0
    %1484 = vmatprep.mubr.f32.mxu0 0.0
    %1485 = vmatmul.mubr.f32.gmra.mrb[0].mxu0 %v239
    %v1486 = vpop.f32.mrb[0].mxu0
    %v1487 = vadd.f32 0.0, %v1486
    %v1488 = vpop.f32.mrb[0].mxu0
    %1489 = vmatprep.mubr.f32.mxu0 0.0
    %1490 = vmatmul.mubr.f32.gmra.mrb[0].mxu0 %v242
    %v1491 = vpop.f32.mrb[0].mxu0
    %v1492 = vadd.f32 0.0, %v1491
    %v1493 = vpop.f32.mrb[0].mxu0
    %1494 = vmatprep.mubr.f32.mxu0 0.0
    %1495 = vmatmul.mubr.f32.gmra.mrb[0].mxu0 %v245
    %v1496 = vpop.f32.mrb[0].mxu0
    %v1497 = vadd.f32 0.0, %v1496
    %v1498 = vpop.f32.mrb[0].mxu0
    %1499 = vmatprep.mubr.f32.mxu0 0.0
    %1500 = vmatmul.mubr.f32.gmra.mrb[0].mxu0 %v248
    %v1501 = vpop.f32.mrb[0].mxu0
    %v1502 = vadd.f32 0.0, %v1501
    %v1503 = vpop.f32.mrb[0].mxu0
    %1504 = vmatprep.mubr.f32.mxu0 0.0
    %1505 = vmatmul.mubr.f32.gmra.mrb[0].mxu0 %v251
    %v1506 = vpop.f32.mrb[0].mxu0
    %v1507 = vadd.f32 0.0, %v1506
    %v1508 = vpop.f32.mrb[0].mxu0
    %1509 = vmatprep.mubr.f32.mxu0 0.0
    %1510 = vmatmul.mubr.f32.gmra.mrb[0].mxu0 %v254
    %v1511 = vpop.f32.mrb[0].mxu0
    %v1512 = vadd.f32 0.0, %v1511
    %v1513 = vpop.f32.mrb[0].mxu0
    %1514 = vmatprep.mubr.f32.mxu0 0.0
    %1515 = vmatmul.mubr.f32.gmra.mrb[0].mxu0 %v257
    %v1516 = vpop.f32.mrb[0].mxu0
    %v1517 = vadd.f32 0.0, %v1516
    %v1518 = vpop.f32.mrb[0].mxu0
    %1519 = vmatprep.mubr.f32.mxu0 0.0
    %1520 = vmatmul.mubr.f32.gmra.mrb[0].mxu0 %v260
    %v1521 = vpop.f32.mrb[0].mxu0
    %v1522 = vadd.f32 0.0, %v1521
    %v1523 = vpop.f32.mrb[0].mxu0
    %1524 = vdwg.mxu0
    %v1526 = vcombine.high %v1415, %v1415
    %v1528 = vunpack.c.l.s4 1966171168
    %v1529 = vunpack.c.0.s8 %v1528
    %v1530 = vlaneseq
    %v1531 = vshrl.u32 %v1530, 7
    %v1532 = vsub.s32 %v1529, %v1531
    %v1533 = vrot.slane %v1415, %v1532
    %v1535 = vunpack.c.l.s4 1966171168
    %v1536 = vunpack.c.0.s8 %v1535
    %v1537 = vlaneseq
    %v1538 = vshrl.u32 %v1537, 7
    %v1539 = vsub.s32 %v1536, %v1538
    %v1540 = vrot.slane %v1526, %v1539
    %v1541 = vcombine.high %v1533, %v1533
    %v1542 = vcombine.high %v1540, %v1540
    %v1544 = vunpack.c.l.s4 1966171168
    %v1545 = vunpack.c.0.s8 %v1544
    %v1546 = vlaneseq
    %v1547 = vshrl.u32 %v1546, 7
    %v1548 = vsub.s32 %v1545, %v1547
    %v1549 = vrot.slane %v1533, %v1548
    %v1551 = vunpack.c.l.s4 1966171168
    %v1552 = vunpack.c.0.s8 %v1551
    %v1553 = vlaneseq
    %v1554 = vshrl.u32 %v1553, 7
    %v1555 = vsub.s32 %v1552, %v1554
    %v1556 = vrot.slane %v1540, %v1555
    %v1558 = vunpack.c.l.s4 1966171168
    %v1559 = vunpack.c.0.s8 %v1558
    %v1560 = vlaneseq
    %v1561 = vshrl.u32 %v1560, 7
    %v1562 = vsub.s32 %v1559, %v1561
    %v1563 = vrot.slane %v1541, %v1562
    %v1565 = vunpack.c.l.s4 1966171168
    %v1566 = vunpack.c.0.s8 %v1565
    %v1567 = vlaneseq
    %v1568 = vshrl.u32 %v1567, 7
    %v1569 = vsub.s32 %v1566, %v1568
    %v1570 = vrot.slane %v1542, %v1569
    %v1571 = vcombine.high %v1549, %v1549
    %v1572 = vcombine.high %v1556, %v1556
    %v1573 = vcombine.high %v1563, %v1563
    %v1574 = vcombine.high %v1570, %v1570
    %v1575 = vlaneseq
    %v1576 = vshrl.u32 %v1575, 7
    %v1577 = vsub.s32 0, %v1576
    %v1578 = vrot.slane %v1549, %v1577
    %v1579 = vlaneseq
    %v1580 = vshrl.u32 %v1579, 7
    %v1581 = vsub.s32 0, %v1580
    %v1582 = vrot.slane %v1563, %v1581
    %v1583 = vlaneseq
    %v1584 = vshrl.u32 %v1583, 7
    %v1585 = vsub.s32 0, %v1584
    %v1586 = vrot.slane %v1571, %v1585
    %v1587 = vlaneseq
    %v1588 = vshrl.u32 %v1587, 7
    %v1589 = vsub.s32 0, %v1588
    %v1590 = vrot.slane %v1573, %v1589
    %v1591 = vlaneseq
    %v1592 = vshrl.u32 %v1591, 7
    %v1593 = vsub.s32 0, %v1592
    %v1594 = vrot.slane %v1556, %v1593
    %v1595 = vlaneseq
    %v1596 = vshrl.u32 %v1595, 7
    %v1597 = vsub.s32 0, %v1596
    %v1598 = vrot.slane %v1570, %v1597
    %v1599 = vlaneseq
    %v1600 = vshrl.u32 %v1599, 7
    %v1601 = vsub.s32 0, %v1600
    %v1602 = vrot.slane %v1572, %v1601
    %v1603 = vlaneseq
    %v1604 = vshrl.u32 %v1603, 7
    %v1605 = vsub.s32 0, %v1604
    %v1606 = vrot.slane %v1574, %v1605
    %v1615 = vadd.f32 %v1413, %v1578
    %v1616 = vadd.f32 %v1413, %v1582
    %v1617 = vadd.f32 %v1413, %v1586
    %v1618 = vadd.f32 %v1413, %v1590
    %v1619 = vadd.f32 %v1413, %v1594
    %v1620 = vadd.f32 %v1413, %v1598
    %v1621 = vadd.f32 %v1413, %v1602
    %v1622 = vadd.f32 %v1413, %v1606
    %v1623 = vadd.f32 %v1615, %v1487
    %v1624 = vadd.f32 %v1616, %v1492
    %v1625 = vadd.f32 %v1617, %v1497
    %v1626 = vadd.f32 %v1618, %v1502
    %v1627 = vadd.f32 %v1619, %v1507
    %v1628 = vadd.f32 %v1620, %v1512
    %v1629 = vadd.f32 %v1621, %v1517
    %v1630 = vadd.f32 %v1622, %v1522
    %vm1631 = vcmp.ge.f32.partialorder %v1623, 0.0
    %vm1632 = vcmp.ge.f32.partialorder %v1624, 0.0
    %vm1633 = vcmp.ge.f32.partialorder %v1625, 0.0
    %vm1634 = vcmp.ge.f32.partialorder %v1626, 0.0
    %vm1635 = vcmp.ge.f32.partialorder %v1627, 0.0
    %vm1636 = vcmp.ge.f32.partialorder %v1628, 0.0
    %vm1637 = vcmp.ge.f32.partialorder %v1629, 0.0
    %vm1638 = vcmp.ge.f32.partialorder %v1630, 0.0
    %v1639 = vmul.f32 %v1623, 0.1
    %v1640 = vmul.f32 %v1624, 0.1
    %v1641 = vmul.f32 %v1625, 0.1
    %v1642 = vmul.f32 %v1626, 0.1
    %v1643 = vmul.f32 %v1627, 0.1
    %v1644 = vmul.f32 %v1628, 0.1
    %v1645 = vmul.f32 %v1629, 0.1
    %v1646 = vmul.f32 %v1630, 0.1
    %v1647 = vsel %vm1631, %v1623, %v1639
    %v1648 = vsel %vm1632, %v1624, %v1640
    %v1649 = vsel %vm1633, %v1625, %v1641
    %v1650 = vsel %vm1634, %v1626, %v1642
    %v1651 = vsel %vm1635, %v1627, %v1643
    %v1652 = vsel %vm1636, %v1628, %v1644
    %v1653 = vsel %vm1637, %v1629, %v1645
    %v1654 = vsel %vm1638, %v1630, %v1646
    %v1655 = vlaneseq
    %v1656 = vshrl.u32 %v1655, 7
    %v1657 = vsub.s32 0, %v1656
    %v1658 = vrot.slane %v1329, %v1657
    %v1659 = vmul.f32 %v1647, %v1658
    %v1660 = vmul.f32 %v1648, %v1658
    %v1661 = vmul.f32 %v1649, %v1658
    %v1662 = vmul.f32 %v1650, %v1658
    %v1663 = vmul.f32 %v1651, %v1658
    %v1664 = vmul.f32 %v1652, %v1658
    %v1665 = vmul.f32 %v1653, %v1658
    %v1666 = vmul.f32 %v1654, %v1658
    %v1667 = vsel %vm162, %v1659, 0.0
    %1668 = vadd.xlane.f32.xlu0 %v1667
    %v1669 = vpop.xlane.xlu0 %1668
    %v1670 = vsel %vm162, %v1660, 0.0
    %1671 = vadd.xlane.f32.xlu0 %v1670
    %v1672 = vpop.xlane.xlu0 %1671
    %v1673 = vsel %vm162, %v1661, 0.0
    %1674 = vadd.xlane.f32.xlu0 %v1673
    %v1675 = vpop.xlane.xlu0 %1674
    %v1676 = vsel %vm162, %v1662, 0.0
    %1677 = vadd.xlane.f32.xlu0 %v1676
    %v1678 = vpop.xlane.xlu0 %1677
    %v1679 = vsel %vm162, %v1663, 0.0
    %1680 = vadd.xlane.f32.xlu0 %v1679
    %v1681 = vpop.xlane.xlu0 %1680
    %v1682 = vsel %vm162, %v1664, 0.0
    %1683 = vadd.xlane.f32.xlu0 %v1682
    %v1684 = vpop.xlane.xlu0 %1683
    %v1685 = vsel %vm162, %v1665, 0.0
    %1686 = vadd.xlane.f32.xlu0 %v1685
    %v1687 = vpop.xlane.xlu0 %1686
    %v1688 = vsel %vm162, %v1666, 0.0
    %1689 = vadd.xlane.f32.xlu0 %v1688
    %v1690 = vpop.xlane.xlu0 %1689
    %v1699 = vlaneseq
    %v1700 = vshrl.u32 %v1699, 7
    %v1701 = vsub.s32 %v546, %v1700
    %v1702 = vrot.slane %v1669, %v1701
    %v1703 = vlaneseq
    %v1704 = vshrl.u32 %v1703, 7
    %v1705 = vsub.s32 %v546, %v1704
    %v1706 = vrot.slane %v1672, %v1705
    %v1707 = vlaneseq
    %v1708 = vshrl.u32 %v1707, 7
    %v1709 = vsub.s32 %v546, %v1708
    %v1710 = vrot.slane %v1675, %v1709
    %v1711 = vlaneseq
    %v1712 = vshrl.u32 %v1711, 7
    %v1713 = vsub.s32 %v546, %v1712
    %v1714 = vrot.slane %v1678, %v1713
    %v1715 = vlaneseq
    %v1716 = vshrl.u32 %v1715, 7
    %v1717 = vsub.s32 %v546, %v1716
    %v1718 = vrot.slane %v1681, %v1717
    %v1719 = vlaneseq
    %v1720 = vshrl.u32 %v1719, 7
    %v1721 = vsub.s32 %v546, %v1720
    %v1722 = vrot.slane %v1684, %v1721
    %v1723 = vlaneseq
    %v1724 = vshrl.u32 %v1723, 7
    %v1725 = vsub.s32 %v546, %v1724
    %v1726 = vrot.slane %v1687, %v1725
    %v1727 = vlaneseq
    %v1728 = vshrl.u32 %v1727, 7
    %v1729 = vsub.s32 %v546, %v1728
    %v1730 = vrot.slane %v1690, %v1729
    %v1731 = vsel %vm579, %v1706, %v1702
    %v1732 = vsel %vm581, %v1710, %v1731
    %v1733 = vsel %vm583, %v1714, %v1732
    %v1734 = vsel %vm585, %v1718, %v1733
    %v1735 = vsel %vm587, %v1722, %v1734
    %v1736 = vsel %vm589, %v1726, %v1735
    %v1737 = vsel %vm591, %v1730, %v1736
    %v1739 = vsel %vm44, %v1737, -1e+30
    %v1740 = vsel %vm595, %v1739, -inf
    %1741 = vmax.xlane.f32.xlu0 %v1740
    %v1742 = vpop.xlane.xlu0 %1741
    %v1743 = vsub.f32 %v1739, %v1742
    %v1744 = vmul.f32 %v1743, 1.442695
    %v1745 = vpow.pop %v1744
    %v1746 = vsel %vm595, %v1745, 0.0
    %1747 = vadd.xlane.f32.xlu0 %v1746
    %v1748 = vpop.xlane.xlu0 %1747
    %v1749 = vrcp.pop %v1748
    %v1750 = vmul.f32 %v1745, %v1749
    %v1751 = vlaneseq
    %v1752 = vshrl.u32 %v1751, 7
    %v1753 = vsub.s32 1, %v1752
    %v1754 = vrot.slane %v1329, %v1753
    %1756 = vrot.lane.b32.xlu0 %v1754, 32
    %v1757 = vpop.permute.xlu0 %1756
    %v1759 = vmul.f32 %v1647, %v1757
    %v1760 = vmul.f32 %v1648, %v1757
    %v1761 = vmul.f32 %v1649, %v1757
    %v1762 = vmul.f32 %v1650, %v1757
    %v1763 = vmul.f32 %v1651, %v1757
    %v1764 = vmul.f32 %v1652, %v1757
    %v1765 = vmul.f32 %v1653, %v1757
    %v1766 = vmul.f32 %v1654, %v1757
    %1775 = vrot.lane.b32.xlu0 %v1759, 96
    %v1776 = vpop.permute.xlu0 %1775
    %1777 = vrot.lane.b32.xlu0 %v1760, 96
    %v1778 = vpop.permute.xlu0 %1777
    %1779 = vrot.lane.b32.xlu0 %v1761, 96
    %v1780 = vpop.permute.xlu0 %1779
    %1781 = vrot.lane.b32.xlu0 %v1762, 96
    %v1782 = vpop.permute.xlu0 %1781
    %1783 = vrot.lane.b32.xlu0 %v1763, 96
    %v1784 = vpop.permute.xlu0 %1783
    %1785 = vrot.lane.b32.xlu0 %v1764, 96
    %v1786 = vpop.permute.xlu0 %1785
    %1787 = vrot.lane.b32.xlu0 %v1765, 96
    %v1788 = vpop.permute.xlu0 %1787
    %1789 = vrot.lane.b32.xlu0 %v1766, 96
    %v1790 = vpop.permute.xlu0 %1789
    %v1799 = vsel %vm162, %v1776, 0.0
    %1800 = vadd.xlane.f32.xlu0 %v1799
    %v1801 = vpop.xlane.xlu0 %1800
    %v1802 = vsel %vm162, %v1778, 0.0
    %1803 = vadd.xlane.f32.xlu0 %v1802
    %v1804 = vpop.xlane.xlu0 %1803
    %v1805 = vsel %vm162, %v1780, 0.0
    %1806 = vadd.xlane.f32.xlu0 %v1805
    %v1807 = vpop.xlane.xlu0 %1806
    %v1808 = vsel %vm162, %v1782, 0.0
    %1809 = vadd.xlane.f32.xlu0 %v1808
    %v1810 = vpop.xlane.xlu0 %1809
    %v1811 = vsel %vm162, %v1784, 0.0
    %1812 = vadd.xlane.f32.xlu0 %v1811
    %v1813 = vpop.xlane.xlu0 %1812
    %v1814 = vsel %vm162, %v1786, 0.0
    %1815 = vadd.xlane.f32.xlu0 %v1814
    %v1816 = vpop.xlane.xlu0 %1815
    %v1817 = vsel %vm162, %v1788, 0.0
    %1818 = vadd.xlane.f32.xlu0 %v1817
    %v1819 = vpop.xlane.xlu0 %1818
    %v1820 = vsel %vm162, %v1790, 0.0
    %1821 = vadd.xlane.f32.xlu0 %v1820
    %v1822 = vpop.xlane.xlu0 %1821
    %v1831 = vlaneseq
    %v1832 = vshrl.u32 %v1831, 7
    %v1833 = vsub.s32 %v546, %v1832
    %v1834 = vrot.slane %v1801, %v1833
    %v1835 = vlaneseq
    %v1836 = vshrl.u32 %v1835, 7
    %v1837 = vsub.s32 %v546, %v1836
    %v1838 = vrot.slane %v1804, %v1837
    %v1839 = vlaneseq
    %v1840 = vshrl.u32 %v1839, 7
    %v1841 = vsub.s32 %v546, %v1840
    %v1842 = vrot.slane %v1807, %v1841
    %v1843 = vlaneseq
    %v1844 = vshrl.u32 %v1843, 7
    %v1845 = vsub.s32 %v546, %v1844
    %v1846 = vrot.slane %v1810, %v1845
    %v1847 = vlaneseq
    %v1848 = vshrl.u32 %v1847, 7
    %v1849 = vsub.s32 %v546, %v1848
    %v1850 = vrot.slane %v1813, %v1849
    %v1851 = vlaneseq
    %v1852 = vshrl.u32 %v1851, 7
    %v1853 = vsub.s32 %v546, %v1852
    %v1854 = vrot.slane %v1816, %v1853
    %v1855 = vlaneseq
    %v1856 = vshrl.u32 %v1855, 7
    %v1857 = vsub.s32 %v546, %v1856
    %v1858 = vrot.slane %v1819, %v1857
    %v1859 = vlaneseq
    %v1860 = vshrl.u32 %v1859, 7
    %v1861 = vsub.s32 %v546, %v1860
    %v1862 = vrot.slane %v1822, %v1861
    %v1863 = vsel %vm579, %v1838, %v1834
    %v1864 = vsel %vm581, %v1842, %v1863
    %v1865 = vsel %vm583, %v1846, %v1864
    %v1866 = vsel %vm585, %v1850, %v1865
    %v1867 = vsel %vm587, %v1854, %v1866
    %v1868 = vsel %vm589, %v1858, %v1867
    %v1869 = vsel %vm591, %v1862, %v1868
    %v1871 = vsel %vm44, %v1869, -1e+30
    %v1872 = vsel %vm595, %v1871, -inf
    %1873 = vmax.xlane.f32.xlu0 %v1872
    %v1874 = vpop.xlane.xlu0 %1873
    %v1875 = vsub.f32 %v1871, %v1874
    %v1876 = vmul.f32 %v1875, 1.442695
    %v1877 = vpow.pop %v1876
    %v1878 = vsel %vm595, %v1877, 0.0
    %1879 = vadd.xlane.f32.xlu0 %v1878
    %v1880 = vpop.xlane.xlu0 %1879
    %v1881 = vrcp.pop %v1880
    %v1882 = vmul.f32 %v1877, %v1881
    %1884 = vrot.lane.b32.xlu0 %v1413, 96
    %v1885 = vpop.permute.xlu0 %1884
    %v1888 = vsel %vm595, %v1882, 0
    %1890 = vmatprep.subr.mxu0 0.0
    %1891 = vmatpush1.msra.mxu0 %v1885
    %1892 = vmatprep.subr.mxu0 0.0
    %1893 = vmatpush1.msra.mxu0 0.0
    %1894 = vmatprep.subr.mxu0 0.0
    %1895 = vmatpush1.msra.mxu0 0.0
    %1896 = vmatprep.subr.mxu0 0.0
    %1897 = vmatpush1.msra.mxu0 0.0
    %1898 = vmatprep.subr.mxu0 0.0
    %1899 = vmatpush1.msra.mxu0 0.0
    %1900 = vmatprep.subr.mxu0 0.0
    %1901 = vmatpush1.msra.mxu0 0.0
    %1902 = vmatprep.subr.mxu0 0.0
    %1903 = vmatpush1.msra.mxu0 0.0
    %1904 = vmatprep.subr.mxu0 0.0
    %1905 = vmatpush1.msra.mxu0 0.0
    %1906 = vmatprep.subr.mxu0 0.0
    %1907 = vmatpush1.msra.mxu0 0.0
    %1908 = vmatprep.subr.mxu0 0.0
    %1909 = vmatpush1.msra.mxu0 0.0
    %1910 = vmatprep.subr.mxu0 0.0
    %1911 = vmatpush1.msra.mxu0 0.0
    %1912 = vmatprep.subr.mxu0 0.0
    %1913 = vmatpush1.msra.mxu0 0.0
    %1914 = vmatprep.subr.mxu0 0.0
    %1915 = vmatpush1.msra.mxu0 0.0
    %1916 = vmatprep.subr.mxu0 0.0
    %1917 = vmatpush1.msra.mxu0 0.0
    %1918 = vmatprep.subr.mxu0 0.0
    %1919 = vmatpush1.msra.mxu0 0.0
    %1920 = vmatprep.subr.mxu0 0.0
    %1921 = vmatpush1.msra.mxu0 0.0
    %1922 = vmatprep.subr.mxu0 0.0
    %1923 = vmatpush1.msra.mxu0 0.0
    %1924 = vmatprep.subr.mxu0 0.0
    %1925 = vmatpush1.msra.mxu0 0.0
    %1926 = vmatprep.subr.mxu0 0.0
    %1927 = vmatpush1.msra.mxu0 0.0
    %1928 = vmatprep.subr.mxu0 0.0
    %1929 = vmatpush1.msra.mxu0 0.0
    %1930 = vmatprep.subr.mxu0 0.0
    %1931 = vmatpush1.msra.mxu0 0.0
    %1932 = vmatprep.subr.mxu0 0.0
    %1933 = vmatpush1.msra.mxu0 0.0
    %1934 = vmatprep.subr.mxu0 0.0
    %1935 = vmatpush1.msra.mxu0 0.0
    %1936 = vmatprep.subr.mxu0 0.0
    %1937 = vmatpush1.msra.mxu0 0.0
    %1938 = vmatprep.subr.mxu0 0.0
    %1939 = vmatpush1.msra.mxu0 0.0
    %1940 = vmatprep.subr.mxu0 0.0
    %1941 = vmatpush1.msra.mxu0 0.0
    %1942 = vmatprep.subr.mxu0 0.0
    %1943 = vmatpush1.msra.mxu0 0.0
    %1944 = vmatprep.subr.mxu0 0.0
    %1945 = vmatpush1.msra.mxu0 0.0
    %1946 = vmatprep.subr.mxu0 0.0
    %1947 = vmatpush1.msra.mxu0 0.0
    %1948 = vmatprep.subr.mxu0 0.0
    %1949 = vmatpush1.msra.mxu0 0.0
    %1950 = vmatprep.subr.mxu0 0.0
    %1951 = vmatpush1.msra.mxu0 0.0
    %1952 = vmatprep.subr.mxu0 0.0
    %1953 = vmatpush1.msra.mxu0 0.0
    %1954 = vmatprep.mubr.f32.mxu0 0.0
    %1955 = vmatmul.mubr.f32.gmra.mrb[0].mxu0 %v1888
    %v1956 = vpop.f32.mrb[0].mxu0
    %v1957 = vadd.f32 0.0, %v1956
    %v1958 = vpop.f32.mrb[0].mxu0
    %1959 = vdwg.mxu0
    %v1961 = vsel %vm595, %v1750, 0
    %1963 = vmatprep.subr.mxu0 0.0
    %1964 = vmatpush1.msra.mxu0 %v1413
    %1965 = vmatprep.subr.mxu0 0.0
    %1966 = vmatpush1.msra.mxu0 0.0
    %1967 = vmatprep.subr.mxu0 0.0
    %1968 = vmatpush1.msra.mxu0 0.0
    %1969 = vmatprep.subr.mxu0 0.0
    %1970 = vmatpush1.msra.mxu0 0.0
    %1971 = vmatprep.subr.mxu0 0.0
    %1972 = vmatpush1.msra.mxu0 0.0
    %1973 = vmatprep.subr.mxu0 0.0
    %1974 = vmatpush1.msra.mxu0 0.0
    %1975 = vmatprep.subr.mxu0 0.0
    %1976 = vmatpush1.msra.mxu0 0.0
    %1977 = vmatprep.subr.mxu0 0.0
    %1978 = vmatpush1.msra.mxu0 0.0
    %1979 = vmatprep.subr.mxu0 0.0
    %1980 = vmatpush1.msra.mxu0 0.0
    %1981 = vmatprep.subr.mxu0 0.0
    %1982 = vmatpush1.msra.mxu0 0.0
    %1983 = vmatprep.subr.mxu0 0.0
    %1984 = vmatpush1.msra.mxu0 0.0
    %1985 = vmatprep.subr.mxu0 0.0
    %1986 = vmatpush1.msra.mxu0 0.0
    %1987 = vmatprep.subr.mxu0 0.0
    %1988 = vmatpush1.msra.mxu0 0.0
    %1989 = vmatprep.subr.mxu0 0.0
    %1990 = vmatpush1.msra.mxu0 0.0
    %1991 = vmatprep.subr.mxu0 0.0
    %1992 = vmatpush1.msra.mxu0 0.0
    %1993 = vmatprep.subr.mxu0 0.0
    %1994 = vmatpush1.msra.mxu0 0.0
    %1995 = vmatprep.subr.mxu0 0.0
    %1996 = vmatpush1.msra.mxu0 0.0
    %1997 = vmatprep.subr.mxu0 0.0
    %1998 = vmatpush1.msra.mxu0 0.0
    %1999 = vmatprep.subr.mxu0 0.0
    %2000 = vmatpush1.msra.mxu0 0.0
    %2001 = vmatprep.subr.mxu0 0.0
    %2002 = vmatpush1.msra.mxu0 0.0
    %2003 = vmatprep.subr.mxu0 0.0
    %2004 = vmatpush1.msra.mxu0 0.0
    %2005 = vmatprep.subr.mxu0 0.0
    %2006 = vmatpush1.msra.mxu0 0.0
    %2007 = vmatprep.subr.mxu0 0.0
    %2008 = vmatpush1.msra.mxu0 0.0
    %2009 = vmatprep.subr.mxu0 0.0
    %2010 = vmatpush1.msra.mxu0 0.0
    %2011 = vmatprep.subr.mxu0 0.0
    %2012 = vmatpush1.msra.mxu0 0.0
    %2013 = vmatprep.subr.mxu0 0.0
    %2014 = vmatpush1.msra.mxu0 0.0
    %2015 = vmatprep.subr.mxu0 0.0
    %2016 = vmatpush1.msra.mxu0 0.0
    %2017 = vmatprep.subr.mxu0 0.0
    %2018 = vmatpush1.msra.mxu0 0.0
    %2019 = vmatprep.subr.mxu0 0.0
    %2020 = vmatpush1.msra.mxu0 0.0
    %2021 = vmatprep.subr.mxu0 0.0
    %2022 = vmatpush1.msra.mxu0 0.0
    %2023 = vmatprep.subr.mxu0 0.0
    %2024 = vmatpush1.msra.mxu0 0.0
    %2025 = vmatprep.subr.mxu0 0.0
    %2026 = vmatpush1.msra.mxu0 0.0
    %2027 = vmatprep.mubr.f32.mxu0 0.0
    %2028 = vmatmul.mubr.f32.gmra.mrb[0].mxu0 %v1961
    %v2029 = vpop.f32.mrb[0].mxu0
    %v2030 = vadd.f32 %v1957, %v2029
    %v2031 = vpop.f32.mrb[0].mxu0
    %2032 = vdwg.mxu0
    %v2033 = vlaneseq
    %v2034 = vshrl.u32 %v2033, 7
    %v2035 = vsub.s32 2, %v2034
    %v2036 = vrot.slane %v1329, %v2035
    %2038 = vrot.lane.b32.xlu0 %v2036, 64
    %v2039 = vpop.permute.xlu0 %2038
    %v2041 = vmul.f32 %v1647, %v2039
    %v2042 = vmul.f32 %v1648, %v2039
    %v2043 = vmul.f32 %v1649, %v2039
    %v2044 = vmul.f32 %v1650, %v2039
    %v2045 = vmul.f32 %v1651, %v2039
    %v2046 = vmul.f32 %v1652, %v2039
    %v2047 = vmul.f32 %v1653, %v2039
    %v2048 = vmul.f32 %v1654, %v2039
    %2057 = vrot.lane.b32.xlu0 %v2041, 64
    %v2058 = vpop.permute.xlu0 %2057
    %2059 = vrot.lane.b32.xlu0 %v2042, 64
    %v2060 = vpop.permute.xlu0 %2059
    %2061 = vrot.lane.b32.xlu0 %v2043, 64
    %v2062 = vpop.permute.xlu0 %2061
    %2063 = vrot.lane.b32.xlu0 %v2044, 64
    %v2064 = vpop.permute.xlu0 %2063
    %2065 = vrot.lane.b32.xlu0 %v2045, 64
    %v2066 = vpop.permute.xlu0 %2065
    %2067 = vrot.lane.b32.xlu0 %v2046, 64
    %v2068 = vpop.permute.xlu0 %2067
    %2069 = vrot.lane.b32.xlu0 %v2047, 64
    %v2070 = vpop.permute.xlu0 %2069
    %2071 = vrot.lane.b32.xlu0 %v2048, 64
    %v2072 = vpop.permute.xlu0 %2071
    %v2081 = vsel %vm162, %v2058, 0.0
    %2082 = vadd.xlane.f32.xlu0 %v2081
    %v2083 = vpop.xlane.xlu0 %2082
    %v2084 = vsel %vm162, %v2060, 0.0
    %2085 = vadd.xlane.f32.xlu0 %v2084
    %v2086 = vpop.xlane.xlu0 %2085
    %v2087 = vsel %vm162, %v2062, 0.0
    %2088 = vadd.xlane.f32.xlu0 %v2087
    %v2089 = vpop.xlane.xlu0 %2088
    %v2090 = vsel %vm162, %v2064, 0.0
    %2091 = vadd.xlane.f32.xlu0 %v2090
    %v2092 = vpop.xlane.xlu0 %2091
    %v2093 = vsel %vm162, %v2066, 0.0
    %2094 = vadd.xlane.f32.xlu0 %v2093
    %v2095 = vpop.xlane.xlu0 %2094
    %v2096 = vsel %vm162, %v2068, 0.0
    %2097 = vadd.xlane.f32.xlu0 %v2096
    %v2098 = vpop.xlane.xlu0 %2097
    %v2099 = vsel %vm162, %v2070, 0.0
    %2100 = vadd.xlane.f32.xlu0 %v2099
    %v2101 = vpop.xlane.xlu0 %2100
    %v2102 = vsel %vm162, %v2072, 0.0
    %2103 = vadd.xlane.f32.xlu0 %v2102
    %v2104 = vpop.xlane.xlu0 %2103
    %v2113 = vlaneseq
    %v2114 = vshrl.u32 %v2113, 7
    %v2115 = vsub.s32 %v546, %v2114
    %v2116 = vrot.slane %v2083, %v2115
    %v2117 = vlaneseq
    %v2118 = vshrl.u32 %v2117, 7
    %v2119 = vsub.s32 %v546, %v2118
    %v2120 = vrot.slane %v2086, %v2119
    %v2121 = vlaneseq
    %v2122 = vshrl.u32 %v2121, 7
    %v2123 = vsub.s32 %v546, %v2122
    %v2124 = vrot.slane %v2089, %v2123
    %v2125 = vlaneseq
    %v2126 = vshrl.u32 %v2125, 7
    %v2127 = vsub.s32 %v546, %v2126
    %v2128 = vrot.slane %v2092, %v2127
    %v2129 = vlaneseq
    %v2130 = vshrl.u32 %v2129, 7
    %v2131 = vsub.s32 %v546, %v2130
    %v2132 = vrot.slane %v2095, %v2131
    %v2133 = vlaneseq
    %v2134 = vshrl.u32 %v2133, 7
    %v2135 = vsub.s32 %v546, %v2134
    %v2136 = vrot.slane %v2098, %v2135
    %v2137 = vlaneseq
    %v2138 = vshrl.u32 %v2137, 7
    %v2139 = vsub.s32 %v546, %v2138
    %v2140 = vrot.slane %v2101, %v2139
    %v2141 = vlaneseq
    %v2142 = vshrl.u32 %v2141, 7
    %v2143 = vsub.s32 %v546, %v2142
    %v2144 = vrot.slane %v2104, %v2143
    %v2145 = vsel %vm579, %v2120, %v2116
    %v2146 = vsel %vm581, %v2124, %v2145
    %v2147 = vsel %vm583, %v2128, %v2146
    %v2148 = vsel %vm585, %v2132, %v2147
    %v2149 = vsel %vm587, %v2136, %v2148
    %v2150 = vsel %vm589, %v2140, %v2149
    %v2151 = vsel %vm591, %v2144, %v2150
    %v2153 = vsel %vm44, %v2151, -1e+30
    %v2154 = vsel %vm595, %v2153, -inf
    %2155 = vmax.xlane.f32.xlu0 %v2154
    %v2156 = vpop.xlane.xlu0 %2155
    %v2157 = vsub.f32 %v2153, %v2156
    %v2158 = vmul.f32 %v2157, 1.442695
    %v2159 = vpow.pop %v2158
    %v2160 = vsel %vm595, %v2159, 0.0
    %2161 = vadd.xlane.f32.xlu0 %v2160
    %v2162 = vpop.xlane.xlu0 %2161
    %v2163 = vrcp.pop %v2162
    %v2164 = vmul.f32 %v2159, %v2163
    %2165 = vrot.lane.b32.xlu0 %v1413, 64
    %v2166 = vpop.permute.xlu0 %2165
    %v2169 = vsel %vm595, %v2164, 0
    %2171 = vmatprep.subr.mxu0 0.0
    %2172 = vmatpush1.msra.mxu0 %v2166
    %2173 = vmatprep.subr.mxu0 0.0
    %2174 = vmatpush1.msra.mxu0 0.0
    %2175 = vmatprep.subr.mxu0 0.0
    %2176 = vmatpush1.msra.mxu0 0.0
    %2177 = vmatprep.subr.mxu0 0.0
    %2178 = vmatpush1.msra.mxu0 0.0
    %2179 = vmatprep.subr.mxu0 0.0
    %2180 = vmatpush1.msra.mxu0 0.0
    %2181 = vmatprep.subr.mxu0 0.0
    %2182 = vmatpush1.msra.mxu0 0.0
    %2183 = vmatprep.subr.mxu0 0.0
    %2184 = vmatpush1.msra.mxu0 0.0
    %2185 = vmatprep.subr.mxu0 0.0
    %2186 = vmatpush1.msra.mxu0 0.0
    %2187 = vmatprep.subr.mxu0 0.0
    %2188 = vmatpush1.msra.mxu0 0.0
    %2189 = vmatprep.subr.mxu0 0.0
    %2190 = vmatpush1.msra.mxu0 0.0
    %2191 = vmatprep.subr.mxu0 0.0
    %2192 = vmatpush1.msra.mxu0 0.0
    %2193 = vmatprep.subr.mxu0 0.0
    %2194 = vmatpush1.msra.mxu0 0.0
    %2195 = vmatprep.subr.mxu0 0.0
    %2196 = vmatpush1.msra.mxu0 0.0
    %2197 = vmatprep.subr.mxu0 0.0
    %2198 = vmatpush1.msra.mxu0 0.0
    %2199 = vmatprep.subr.mxu0 0.0
    %2200 = vmatpush1.msra.mxu0 0.0
    %2201 = vmatprep.subr.mxu0 0.0
    %2202 = vmatpush1.msra.mxu0 0.0
    %2203 = vmatprep.subr.mxu0 0.0
    %2204 = vmatpush1.msra.mxu0 0.0
    %2205 = vmatprep.subr.mxu0 0.0
    %2206 = vmatpush1.msra.mxu0 0.0
    %2207 = vmatprep.subr.mxu0 0.0
    %2208 = vmatpush1.msra.mxu0 0.0
    %2209 = vmatprep.subr.mxu0 0.0
    %2210 = vmatpush1.msra.mxu0 0.0
    %2211 = vmatprep.subr.mxu0 0.0
    %2212 = vmatpush1.msra.mxu0 0.0
    %2213 = vmatprep.subr.mxu0 0.0
    %2214 = vmatpush1.msra.mxu0 0.0
    %2215 = vmatprep.subr.mxu0 0.0
    %2216 = vmatpush1.msra.mxu0 0.0
    %2217 = vmatprep.subr.mxu0 0.0
    %2218 = vmatpush1.msra.mxu0 0.0
    %2219 = vmatprep.subr.mxu0 0.0
    %2220 = vmatpush1.msra.mxu0 0.0
    %2221 = vmatprep.subr.mxu0 0.0
    %2222 = vmatpush1.msra.mxu0 0.0
    %2223 = vmatprep.subr.mxu0 0.0
    %2224 = vmatpush1.msra.mxu0 0.0
    %2225 = vmatprep.subr.mxu0 0.0
    %2226 = vmatpush1.msra.mxu0 0.0
    %2227 = vmatprep.subr.mxu0 0.0
    %2228 = vmatpush1.msra.mxu0 0.0
    %2229 = vmatprep.subr.mxu0 0.0
    %2230 = vmatpush1.msra.mxu0 0.0
    %2231 = vmatprep.subr.mxu0 0.0
    %2232 = vmatpush1.msra.mxu0 0.0
    %2233 = vmatprep.subr.mxu0 0.0
    %2234 = vmatpush1.msra.mxu0 0.0
    %2235 = vmatprep.mubr.f32.mxu0 0.0
    %2236 = vmatmul.mubr.f32.gmra.mrb[0].mxu0 %v2169
    %v2237 = vpop.f32.mrb[0].mxu0
    %v2238 = vadd.f32 0.0, %v2237
    %v2239 = vpop.f32.mrb[0].mxu0
    %2240 = vdwg.mxu0
    %v2241 = vadd.f32 %v2030, %v2238
    %v2242 = vlaneseq
    %v2243 = vshrl.u32 %v2242, 7
    %v2244 = vsub.s32 3, %v2243
    %v2245 = vrot.slane %v1329, %v2244
    %2247 = vrot.lane.b32.xlu0 %v2245, 96
    %v2248 = vpop.permute.xlu0 %2247
    %v2250 = vmul.f32 %v1647, %v2248
    %v2251 = vmul.f32 %v1648, %v2248
    %v2252 = vmul.f32 %v1649, %v2248
    %v2253 = vmul.f32 %v1650, %v2248
    %v2254 = vmul.f32 %v1651, %v2248
    %v2255 = vmul.f32 %v1652, %v2248
    %v2256 = vmul.f32 %v1653, %v2248
    %v2257 = vmul.f32 %v1654, %v2248
    %2266 = vrot.lane.b32.xlu0 %v2250, 32
    %v2267 = vpop.permute.xlu0 %2266
    %2268 = vrot.lane.b32.xlu0 %v2251, 32
    %v2269 = vpop.permute.xlu0 %2268
    %2270 = vrot.lane.b32.xlu0 %v2252, 32
    %v2271 = vpop.permute.xlu0 %2270
    %2272 = vrot.lane.b32.xlu0 %v2253, 32
    %v2273 = vpop.permute.xlu0 %2272
    %2274 = vrot.lane.b32.xlu0 %v2254, 32
    %v2275 = vpop.permute.xlu0 %2274
    %2276 = vrot.lane.b32.xlu0 %v2255, 32
    %v2277 = vpop.permute.xlu0 %2276
    %2278 = vrot.lane.b32.xlu0 %v2256, 32
    %v2279 = vpop.permute.xlu0 %2278
    %2280 = vrot.lane.b32.xlu0 %v2257, 32
    %v2281 = vpop.permute.xlu0 %2280
    %v2290 = vsel %vm162, %v2267, 0.0
    %2291 = vadd.xlane.f32.xlu0 %v2290
    %v2292 = vpop.xlane.xlu0 %2291
    %v2293 = vsel %vm162, %v2269, 0.0
    %2294 = vadd.xlane.f32.xlu0 %v2293
    %v2295 = vpop.xlane.xlu0 %2294
    %v2296 = vsel %vm162, %v2271, 0.0
    %2297 = vadd.xlane.f32.xlu0 %v2296
    %v2298 = vpop.xlane.xlu0 %2297
    %v2299 = vsel %vm162, %v2273, 0.0
    %2300 = vadd.xlane.f32.xlu0 %v2299
    %v2301 = vpop.xlane.xlu0 %2300
    %v2302 = vsel %vm162, %v2275, 0.0
    %2303 = vadd.xlane.f32.xlu0 %v2302
    %v2304 = vpop.xlane.xlu0 %2303
    %v2305 = vsel %vm162, %v2277, 0.0
    %2306 = vadd.xlane.f32.xlu0 %v2305
    %v2307 = vpop.xlane.xlu0 %2306
    %v2308 = vsel %vm162, %v2279, 0.0
    %2309 = vadd.xlane.f32.xlu0 %v2308
    %v2310 = vpop.xlane.xlu0 %2309
    %v2311 = vsel %vm162, %v2281, 0.0
    %2312 = vadd.xlane.f32.xlu0 %v2311
    %v2313 = vpop.xlane.xlu0 %2312
    %v2322 = vlaneseq
    %v2323 = vshrl.u32 %v2322, 7
    %v2324 = vsub.s32 %v546, %v2323
    %v2325 = vrot.slane %v2292, %v2324
    %v2326 = vlaneseq
    %v2327 = vshrl.u32 %v2326, 7
    %v2328 = vsub.s32 %v546, %v2327
    %v2329 = vrot.slane %v2295, %v2328
    %v2330 = vlaneseq
    %v2331 = vshrl.u32 %v2330, 7
    %v2332 = vsub.s32 %v546, %v2331
    %v2333 = vrot.slane %v2298, %v2332
    %v2334 = vlaneseq
    %v2335 = vshrl.u32 %v2334, 7
    %v2336 = vsub.s32 %v546, %v2335
    %v2337 = vrot.slane %v2301, %v2336
    %v2338 = vlaneseq
    %v2339 = vshrl.u32 %v2338, 7
    %v2340 = vsub.s32 %v546, %v2339
    %v2341 = vrot.slane %v2304, %v2340
    %v2342 = vlaneseq
    %v2343 = vshrl.u32 %v2342, 7
    %v2344 = vsub.s32 %v546, %v2343
    %v2345 = vrot.slane %v2307, %v2344
    %v2346 = vlaneseq
    %v2347 = vshrl.u32 %v2346, 7
    %v2348 = vsub.s32 %v546, %v2347
    %v2349 = vrot.slane %v2310, %v2348
    %v2350 = vlaneseq
    %v2351 = vshrl.u32 %v2350, 7
    %v2352 = vsub.s32 %v546, %v2351
    %v2353 = vrot.slane %v2313, %v2352
    %v2354 = vsel %vm579, %v2329, %v2325
    %v2355 = vsel %vm581, %v2333, %v2354
    %v2356 = vsel %vm583, %v2337, %v2355
    %v2357 = vsel %vm585, %v2341, %v2356
    %v2358 = vsel %vm587, %v2345, %v2357
    %v2359 = vsel %vm589, %v2349, %v2358
    %v2360 = vsel %vm591, %v2353, %v2359
    %v2362 = vsel %vm44, %v2360, -1e+30
    %v2363 = vsel %vm595, %v2362, -inf
    %2364 = vmax.xlane.f32.xlu0 %v2363
    %v2365 = vpop.xlane.xlu0 %2364
    %v2366 = vsub.f32 %v2362, %v2365
    %v2367 = vmul.f32 %v2366, 1.442695
    %v2368 = vpow.pop %v2367
    %v2369 = vsel %vm595, %v2368, 0.0
    %2370 = vadd.xlane.f32.xlu0 %v2369
    %v2371 = vpop.xlane.xlu0 %2370
    %v2372 = vrcp.pop %v2371
    %v2373 = vmul.f32 %v2368, %v2372
    %2374 = vrot.lane.b32.xlu0 %v1413, 32
    %v2375 = vpop.permute.xlu0 %2374
    %v2378 = vsel %vm595, %v2373, 0
    %2380 = vmatprep.subr.mxu0 0.0
    %2381 = vmatpush1.msra.mxu0 %v2375
    %2382 = vmatprep.subr.mxu0 0.0
    %2383 = vmatpush1.msra.mxu0 0.0
    %2384 = vmatprep.subr.mxu0 0.0
    %2385 = vmatpush1.msra.mxu0 0.0
    %2386 = vmatprep.subr.mxu0 0.0
    %2387 = vmatpush1.msra.mxu0 0.0
    %2388 = vmatprep.subr.mxu0 0.0
    %2389 = vmatpush1.msra.mxu0 0.0
    %2390 = vmatprep.subr.mxu0 0.0
    %2391 = vmatpush1.msra.mxu0 0.0
    %2392 = vmatprep.subr.mxu0 0.0
    %2393 = vmatpush1.msra.mxu0 0.0
    %2394 = vmatprep.subr.mxu0 0.0
    %2395 = vmatpush1.msra.mxu0 0.0
    %2396 = vmatprep.subr.mxu0 0.0
    %2397 = vmatpush1.msra.mxu0 0.0
    %2398 = vmatprep.subr.mxu0 0.0
    %2399 = vmatpush1.msra.mxu0 0.0
    %2400 = vmatprep.subr.mxu0 0.0
    %2401 = vmatpush1.msra.mxu0 0.0
    %2402 = vmatprep.subr.mxu0 0.0
    %2403 = vmatpush1.msra.mxu0 0.0
    %2404 = vmatprep.subr.mxu0 0.0
    %2405 = vmatpush1.msra.mxu0 0.0
    %2406 = vmatprep.subr.mxu0 0.0
    %2407 = vmatpush1.msra.mxu0 0.0
    %2408 = vmatprep.subr.mxu0 0.0
    %2409 = vmatpush1.msra.mxu0 0.0
    %2410 = vmatprep.subr.mxu0 0.0
    %2411 = vmatpush1.msra.mxu0 0.0
    %2412 = vmatprep.subr.mxu0 0.0
    %2413 = vmatpush1.msra.mxu0 0.0
    %2414 = vmatprep.subr.mxu0 0.0
    %2415 = vmatpush1.msra.mxu0 0.0
    %2416 = vmatprep.subr.mxu0 0.0
    %2417 = vmatpush1.msra.mxu0 0.0
    %2418 = vmatprep.subr.mxu0 0.0
    %2419 = vmatpush1.msra.mxu0 0.0
    %2420 = vmatprep.subr.mxu0 0.0
    %2421 = vmatpush1.msra.mxu0 0.0
    %2422 = vmatprep.subr.mxu0 0.0
    %2423 = vmatpush1.msra.mxu0 0.0
    %2424 = vmatprep.subr.mxu0 0.0
    %2425 = vmatpush1.msra.mxu0 0.0
    %2426 = vmatprep.subr.mxu0 0.0
    %2427 = vmatpush1.msra.mxu0 0.0
    %2428 = vmatprep.subr.mxu0 0.0
    %2429 = vmatpush1.msra.mxu0 0.0
    %2430 = vmatprep.subr.mxu0 0.0
    %2431 = vmatpush1.msra.mxu0 0.0
    %2432 = vmatprep.subr.mxu0 0.0
    %2433 = vmatpush1.msra.mxu0 0.0
    %2434 = vmatprep.subr.mxu0 0.0
    %2435 = vmatpush1.msra.mxu0 0.0
    %2436 = vmatprep.subr.mxu0 0.0
    %2437 = vmatpush1.msra.mxu0 0.0
    %2438 = vmatprep.subr.mxu0 0.0
    %2439 = vmatpush1.msra.mxu0 0.0
    %2440 = vmatprep.subr.mxu0 0.0
    %2441 = vmatpush1.msra.mxu0 0.0
    %2442 = vmatprep.subr.mxu0 0.0
    %2443 = vmatpush1.msra.mxu0 0.0
    %2444 = vmatprep.mubr.f32.mxu0 0.0
    %2445 = vmatmul.mubr.f32.gmra.mrb[0].mxu0 %v2378
    %v2446 = vpop.f32.mrb[0].mxu0
    %v2447 = vadd.f32 0.0, %v2446
    %v2448 = vpop.f32.mrb[0].mxu0
    %2449 = vdwg.mxu0
    %v2450 = vadd.f32 %v2241, %v2447
    %v2451 = vmul.f32 %v2450, 0.25
    %v2453 = vlaneseq
    %v2454 = vshrl.u32 %v2453, 7
    %v2455 = vsub.s32 0, %v2454
    %v2456 = vrot.slane %v1331, %v2455
    %v2458 = vadd.f32 %v2451, %v2456
    %v2459 = vld [vmem:[%s10] sm:$0xff]
    %v2460 = vld [vmem:[%s10 + $0x8] sm:$0xff]
    %v2461 = vld [vmem:[%s10 + $0x10] sm:$0xff]
    %v2462 = vld [vmem:[%s10 + $0x18] sm:$0xff]
    %v2463 = vld [vmem:[%s11] sm:$0x1]
    %v2465 = vlaneseq
    %v2466 = vshrl.u32 %v2465, 7
    %v2467 = vsub.s32 0, %v2466
    %v2468 = vrot.slane %v2463, %v2467
    %v2471 = vsel %vm162, %v2458, 0
    %2473 = vmatprep.subr.mxu0 0.0
    %2474 = vmatpush1.msra.mxu0 %v2459
    %2475 = vmatprep.subr.mxu0 0.0
    %2476 = vmatpush1.msra.mxu0 %v2460
    %2477 = vmatprep.subr.mxu0 0.0
    %2478 = vmatpush1.msra.mxu0 %v2461
    %2479 = vmatprep.subr.mxu0 0.0
    %2480 = vmatpush1.msra.mxu0 %v2462
    %2481 = vmatprep.subr.mxu0 0.0
    %2482 = vmatpush1.msra.mxu0 0.0
    %2483 = vmatprep.subr.mxu0 0.0
    %2484 = vmatpush1.msra.mxu0 0.0
    %2485 = vmatprep.subr.mxu0 0.0
    %2486 = vmatpush1.msra.mxu0 0.0
    %2487 = vmatprep.subr.mxu0 0.0
    %2488 = vmatpush1.msra.mxu0 0.0
    %2489 = vmatprep.subr.mxu0 0.0
    %2490 = vmatpush1.msra.mxu0 0.0
    %2491 = vmatprep.subr.mxu0 0.0
    %2492 = vmatpush1.msra.mxu0 0.0
    %2493 = vmatprep.subr.mxu0 0.0
    %2494 = vmatpush1.msra.mxu0 0.0
    %2495 = vmatprep.subr.mxu0 0.0
    %2496 = vmatpush1.msra.mxu0 0.0
    %2497 = vmatprep.subr.mxu0 0.0
    %2498 = vmatpush1.msra.mxu0 0.0
    %2499 = vmatprep.subr.mxu0 0.0
    %2500 = vmatpush1.msra.mxu0 0.0
    %2501 = vmatprep.subr.mxu0 0.0
    %2502 = vmatpush1.msra.mxu0 0.0
    %2503 = vmatprep.subr.mxu0 0.0
    %2504 = vmatpush1.msra.mxu0 0.0
    %2505 = vmatprep.subr.mxu0 0.0
    %2506 = vmatpush1.msra.mxu0 0.0
    %2507 = vmatprep.subr.mxu0 0.0
    %2508 = vmatpush1.msra.mxu0 0.0
    %2509 = vmatprep.subr.mxu0 0.0
    %2510 = vmatpush1.msra.mxu0 0.0
    %2511 = vmatprep.subr.mxu0 0.0
    %2512 = vmatpush1.msra.mxu0 0.0
    %2513 = vmatprep.subr.mxu0 0.0
    %2514 = vmatpush1.msra.mxu0 0.0
    %2515 = vmatprep.subr.mxu0 0.0
    %2516 = vmatpush1.msra.mxu0 0.0
    %2517 = vmatprep.subr.mxu0 0.0
    %2518 = vmatpush1.msra.mxu0 0.0
    %2519 = vmatprep.subr.mxu0 0.0
    %2520 = vmatpush1.msra.mxu0 0.0
    %2521 = vmatprep.subr.mxu0 0.0
    %2522 = vmatpush1.msra.mxu0 0.0
    %2523 = vmatprep.subr.mxu0 0.0
    %2524 = vmatpush1.msra.mxu0 0.0
    %2525 = vmatprep.subr.mxu0 0.0
    %2526 = vmatpush1.msra.mxu0 0.0
    %2527 = vmatprep.subr.mxu0 0.0
    %2528 = vmatpush1.msra.mxu0 0.0
    %2529 = vmatprep.subr.mxu0 0.0
    %2530 = vmatpush1.msra.mxu0 0.0
    %2531 = vmatprep.subr.mxu0 0.0
    %2532 = vmatpush1.msra.mxu0 0.0
    %2533 = vmatprep.subr.mxu0 0.0
    %2534 = vmatpush1.msra.mxu0 0.0
    %2535 = vmatprep.subr.mxu0 0.0
    %2536 = vmatpush1.msra.mxu0 0.0
    %2537 = vmatprep.mubr.f32.mxu0 0.0
    %2538 = vmatmul.mubr.f32.gmra.mrb[0].mxu0 %v2471
    %v2539 = vpop.f32.mrb[0].mxu0
    %v2540 = vadd.f32 %v2468, %v2539
    %v2541 = vpop.f32.mrb[0].mxu0
    %2542 = vdwg.mxu0
    %vm2543 = vcmp.ge.f32.partialorder %v2540, 0.0
    %v2544 = vmul.f32 %v2540, 0.1
    %v2545 = vsel %vm2543, %v2540, %v2544
    %2546 = vst.msk [vmem:[#allocation2] sm:$0xff] %vm595, %v2545
    // Predicated region
    $region50: #{graph_attention_block_forward.1} parent=1 // pred_check
      _
    $region51: #{graph_attention_block_forward.1} parent=1 // pred_check_branch
      %2548 = sbr.rel (0) target = $region53
    $region52: #{graph_attention_block_forward.1} parent=1 // pred_region
      %s2550 = ssub.s32 128, 128
      %2551 = vsyncadd [#allocation3], %s2550
      %s2553 = sshll.u32 [#allocation2], 4
      %s2554 = int_to_ptr.vmem [resolvable:$true] %s2553
      %2556 = dma.vmem_to_hbm [thread:$0]  %s2554, 128, %s12, [#allocation3]
    $region53: #{graph_attention_block_forward.1} parent=1 // pred_fallthru
      _
    // Predicated region
    $region54: #{graph_attention_block_forward.1} parent=1 // pred_check
      _
    $region55: #{graph_attention_block_forward.1} parent=1 // pred_check_branch
      %2558 = sbr.rel (0) target = $region57
    $region56: #{graph_attention_block_forward.1} parent=1 // pred_region
      %2559 = dma.done [#allocation3], 128
    $region57: #{graph_attention_block_forward.1} parent=1 // pred_fallthru
      _
    %2560 = vsyncpa [#allocation3], 1

</llo_original>
